<compile_context>
chip_gen: v5e
topology: v5e:2x2
jax: 0.10.0
libtpu: 0.0.40
codegen_flags: <defaults>
</compile_context>

<pallas_src>
import jax
import jax.numpy as jnp
from jax.experimental import pallas as pl
from jax.experimental.pallas import tpu as pltpu

NUM_LAYERS = 15
# (in_features, out_features) per layer, matching the PyTorch module.
LAYER_DIMS = [(10, 32), (32, 64)] + [(64, 64)] * 10 + [(64, 32), (32, 16), (16, 4)]
D_IN = 10        # real input features
D_OUT = 4        # real output features
IN_PAD = 16      # input padded 10 -> 16 (full-dim block; avoids 128-lane HBM blowup)
OUT_PAD = 8      # output padded 4 -> 8 (narrow masked store << 128-lane HBM cost)
D_PAD = 128      # lane-padded hidden width for the resident weight slab


def _make_kernel(split: bool):
    """14x (matmul + bf16 bias + ReLU) then matmul + bias + sigmoid.

    Matmuls run in bf16 on the MXU with f32 accumulation.  When `split` is
    True the batch tile is processed as two independent row sub-chains so the
    LLO scheduler can overlap one chain's MXU work with the other's epilogue.
    """

    def mlp_kernel(x_ref, w_ref, b_ref, o_ref):
        tb = x_ref.shape[0]
        nsub = 2 if split else 1
        rows = tb // nsub
        # (rows, 16) bf16 sub-tiles (input already bf16, no in-kernel cast).
        hs = [x_ref[s * rows:(s + 1) * rows, :] for s in range(nsub)]

        # Layer 0: contract only the 16 live input rows of the padded weight tile.
        w0 = w_ref[0][:IN_PAD, :]                       # (16, 128) bf16
        b0 = b_ref[0]                                   # (128,) bf16
        zs = [jnp.dot(h, w0, preferred_element_type=jnp.float32) for h in hs]
        hs = [jnp.maximum(z.astype(jnp.bfloat16) + b0, 0) for z in zs]

        # Hidden layers 1..13: bf16 epilogue (single cast, bf16 bias-add + ReLU).
        for l in range(1, NUM_LAYERS - 1):
            wl = w_ref[l]
            bl = b_ref[l]
            zs = [jnp.dot(h, wl, preferred_element_type=jnp.float32) for h in hs]
            hs = [jnp.maximum(z.astype(jnp.bfloat16) + bl, 0) for z in zs]

        # Final layer: f32 pre-activation, sigmoid via exp + approx reciprocal (EUP).
        wl = w_ref[NUM_LAYERS - 1]
        bl = b_ref[NUM_LAYERS - 1]
        for s in range(nsub):
            z = jnp.dot(hs[s], wl, preferred_element_type=jnp.float32) + bl
            z = z[:, :OUT_PAD]                          # (rows, 8) f32
            o_ref[s * rows:(s + 1) * rows, :] = pl.reciprocal(
                1.0 + jnp.exp(-z), approx=True)

    return mlp_kernel


def _choose_grid(batch):
    """Return (batch tile TB, grid steps).

    Large batches: tiles up to 1024 rows (activations stay ~1 MiB, far under
    any VMEM limit), an EVEN number of grid steps >= 2 so both v7x TensorCores
    get balanced work, TB a multiple of 16 so the two sub-chains stay
    sublane-aligned.  Tiny batches: a single TB=8 latency-path tile per step.
    """
    if batch <= 16:
        tb = 8
        return tb, -(-batch // tb)
    steps = max(2, -(-batch // 1024))
    if steps % 2:
        steps += 1
    tb = -(-batch // steps)
    tb = ((tb + 15) // 16) * 16
    return tb, steps


def mlp_forward(x, w_bf16, b_bf16):
    """x: (B, 10) float32 -> (B, 4) float32."""
    B = x.shape[0]
    tb, steps = _choose_grid(B)
    b_pad = tb * steps
    # Pad directly in bf16 (halves input DMA; no in-kernel cast needed).
    x_pad = jnp.zeros((b_pad, IN_PAD), jnp.bfloat16)
    x_pad = x_pad.at[:B, :D_IN].set(x.astype(jnp.bfloat16))
    split = tb >= 64   # only worth two chains when each half still feeds the MXU well

    out = pl.pallas_call(
        _make_kernel(split),
        out_shape=jax.ShapeDtypeStruct((b_pad, OUT_PAD), jnp.float32),
        grid_spec=pltpu.PrefetchScalarGridSpec(
            num_scalar_prefetch=0,
            grid=(steps,),
            in_specs=[
                pl.BlockSpec((tb, IN_PAD), lambda i: (i, 0)),
                # Constant index_map -> weight/bias blocks DMA'd once, reused.
                pl.BlockSpec((NUM_LAYERS, D_PAD, D_PAD), lambda i: (0, 0, 0)),
                pl.BlockSpec((NUM_LAYERS, D_PAD), lambda i: (0, 0)),
            ],
            out_specs=pl.BlockSpec((tb, OUT_PAD), lambda i: (i, 0)),
        ),
        compiler_params=pltpu.CompilerParams(
            dimension_semantics=("parallel",)),
    )(x_pad, w_bf16, b_bf16)
    return out[:B, :D_OUT]


def init_params(key):
    """Deterministic init mimicking nn.Linear default (uniform +-1/sqrt(fan_in)).

    Weights stored as (in, out), zero-padded into (15, 128, 128) / (15, 128).
    Zero padding is correct: padded hidden units stay exactly 0 through ReLU
    layers and have zero outgoing weights, so they never affect real outputs.
    """
    w_stack = jnp.zeros((NUM_LAYERS, D_PAD, D_PAD), jnp.float32)
    b_stack = jnp.zeros((NUM_LAYERS, D_PAD), jnp.float32)
    for l, (fin, fout) in enumerate(LAYER_DIMS):
        key, kw, kb = jax.random.split(key, 3)
        bound = 1.0 / jnp.sqrt(jnp.float32(fin))
        w = jax.random.uniform(kw, (fin, fout), jnp.float32, -bound, bound)
        b = jax.random.uniform(kb, (fout,), jnp.float32, -bound, bound)
        w_stack = w_stack.at[l, :fin, :fout].set(w)
        b_stack = b_stack.at[l, :fout].set(b)
    return w_stack, b_stack


def reference_forward(x, w_bf16, b_bf16):
    """Pure-JAX reference mirroring the kernel math exactly
    (bf16 weights/activations, f32 MXU accumulation, bf16 hidden epilogue)."""
    h = x.astype(jnp.bfloat16)
    for l, (fin, fout) in enumerate(LAYER_DIMS):
        z = jnp.dot(h, w_bf16[l, :fin, :fout], preferred_element_type=jnp.float32)
        if l == NUM_LAYERS - 1:
            h = jax.nn.sigmoid(z + b_bf16[l, :fout])
        else:
            h = jnp.maximum(z.astype(jnp.bfloat16) + b_bf16[l, :fout], 0)
    return h


if __name__ == "__main__":
    key = jax.random.PRNGKey(0)
    key, kx, kx2 = jax.random.split(key, 3)
    w_stack, b_stack = init_params(key)
    # bf16 conversion happens ONCE, outside the forward (no per-call cast op).
    w_bf16 = jax.device_put(w_stack.astype(jnp.bfloat16))
    b_bf16 = jax.device_put(b_stack.astype(jnp.bfloat16))

    # Small batch: single TB=8 tile (latency path), matching the tiny input dim.
    x_small = jax.random.normal(kx, (8, D_IN), jnp.float32)
    y_small = mlp_forward(x_small, w_bf16, b_bf16)
    jax.block_until_ready(y_small)
    ref_small = reference_forward(x_small, w_bf16, b_bf16)
    assert y_small.shape == (8, D_OUT)
    assert jnp.allclose(y_small, ref_small, atol=1e-2), "small-batch mismatch"

    # Larger batch exercises TB=256, grid=2 (even -> both v7x TCs balanced)
    # and the two-sub-chain interleave inside the kernel.
    x_big = jax.random.normal(kx2, (512, D_IN), jnp.float32)
    y_big = mlp_forward(x_big, w_bf16, b_bf16)
    jax.block_until_ready(y_big)
    ref_big = reference_forward(x_big, w_bf16, b_bf16)
    assert y_big.shape == (512, D_OUT)
    assert jnp.allclose(y_big, ref_big, atol=1e-2), "large-batch mismatch"

    print("KERNEL_OK")
</pallas_src>

<mosaic_0001>
module attributes {stable_mosaic.version = 11 : i64} {
  func.func @mlp_kernel(%arg0: i32, %arg1: memref<8x16xbf16, #tpu.memory_space<vmem>>, %arg2: memref<15x128x128xbf16, #tpu.memory_space<vmem>>, %arg3: memref<15x128xbf16, #tpu.memory_space<vmem>>, %arg4: memref<8x8xf32, #tpu.memory_space<vmem>>) attributes {dimension_semantics = [#tpu.dimension_semantics<parallel>], iteration_bounds = array<i64: 1>, scalar_prefetch = 0 : i64, scratch_operands = 0 : i64, tpu.core_type = #tpu.core_type<tc>, window_params = [{transform_indices = @transform_0, window_bounds = array<i64: 8, 16>}, {pipeline_mode = #tpu.pipeline_mode<synchronous>, transform_indices = @transform_1, window_bounds = array<i64: 15, 128, 128>}, {pipeline_mode = #tpu.pipeline_mode<synchronous>, transform_indices = @transform_2, window_bounds = array<i64: 15, 128>}, {transform_indices = @transform_3, window_bounds = array<i64: 8, 8>}]} {
    %c0 = arith.constant 0 : index
    %c0_0 = arith.constant 0 : index
    %0 = vector.load %arg1[%c0, %c0_0] : memref<8x16xbf16, #tpu.memory_space<vmem>>, vector<8x16xbf16>
    %c0_1 = arith.constant 0 : index
    %c0_2 = arith.constant 0 : index
    %c0_3 = arith.constant 0 : index
    %1 = vector.load %arg2[%c0_1, %c0_2, %c0_3] : memref<15x128x128xbf16, #tpu.memory_space<vmem>>, vector<1x128x128xbf16>
    %2 = vector.shape_cast %1 : vector<1x128x128xbf16> to vector<128x128xbf16>
    %3 = vector.extract_strided_slice %2 {offsets = [0, 0], sizes = [16, 128], strides = [1, 1]} : vector<128x128xbf16> to vector<16x128xbf16>
    %c0_4 = arith.constant 0 : index
    %c0_5 = arith.constant 0 : index
    %4 = vector.load %arg3[%c0_4, %c0_5] : memref<15x128xbf16, #tpu.memory_space<vmem>>, vector<1x128xbf16>
    %5 = vector.shape_cast %4 : vector<1x128xbf16> to vector<128xbf16>
    %cst = arith.constant dense<0.000000e+00> : vector<8x128xf32>
    %6 = tpu.matmul %0, %3, %cst {dimension_numbers = #tpu.dot_dimension_numbers<[1], [0], [0], [1], [0, 0, 1, 1], [], []>} : vector<8x16xbf16>, vector<16x128xbf16>, vector<8x128xf32> -> vector<8x128xf32>
    %7 = arith.truncf %6 : vector<8x128xf32> to vector<8x128xbf16>
    %8 = vector.shape_cast %5 : vector<128xbf16> to vector<1x128xbf16>
    %9 = vector.broadcast %8 : vector<1x128xbf16> to vector<8x128xbf16>
    %10 = arith.addf %7, %9 : vector<8x128xbf16>
    %cst_6 = arith.constant 0.000000e+00 : bf16
    %11 = vector.broadcast %cst_6 : bf16 to vector<8x128xbf16>
    %12 = arith.maximumf %10, %11 : vector<8x128xbf16>
    %c1 = arith.constant 1 : index
    %c0_7 = arith.constant 0 : index
    %c0_8 = arith.constant 0 : index
    %13 = vector.load %arg2[%c1, %c0_7, %c0_8] : memref<15x128x128xbf16, #tpu.memory_space<vmem>>, vector<1x128x128xbf16>
    %14 = vector.shape_cast %13 : vector<1x128x128xbf16> to vector<128x128xbf16>
    %c1_9 = arith.constant 1 : index
    %c0_10 = arith.constant 0 : index
    %15 = vector.load %arg3[%c1_9, %c0_10] : memref<15x128xbf16, #tpu.memory_space<vmem>>, vector<1x128xbf16>
    %16 = vector.shape_cast %15 : vector<1x128xbf16> to vector<128xbf16>
    %cst_11 = arith.constant dense<0.000000e+00> : vector<8x128xf32>
    %17 = tpu.matmul %12, %14, %cst_11 {dimension_numbers = #tpu.dot_dimension_numbers<[1], [0], [0], [1], [0, 0, 1, 1], [], []>} : vector<8x128xbf16>, vector<128x128xbf16>, vector<8x128xf32> -> vector<8x128xf32>
    %18 = arith.truncf %17 : vector<8x128xf32> to vector<8x128xbf16>
    %19 = vector.shape_cast %16 : vector<128xbf16> to vector<1x128xbf16>
    %20 = vector.broadcast %19 : vector<1x128xbf16> to vector<8x128xbf16>
    %21 = arith.addf %18, %20 : vector<8x128xbf16>
    %cst_12 = arith.constant 0.000000e+00 : bf16
    %22 = vector.broadcast %cst_12 : bf16 to vector<8x128xbf16>
    %23 = arith.maximumf %21, %22 : vector<8x128xbf16>
    %c2 = arith.constant 2 : index
    %c0_13 = arith.constant 0 : index
    %c0_14 = arith.constant 0 : index
    %24 = vector.load %arg2[%c2, %c0_13, %c0_14] : memref<15x128x128xbf16, #tpu.memory_space<vmem>>, vector<1x128x128xbf16>
    %25 = vector.shape_cast %24 : vector<1x128x128xbf16> to vector<128x128xbf16>
    %c2_15 = arith.constant 2 : index
    %c0_16 = arith.constant 0 : index
    %26 = vector.load %arg3[%c2_15, %c0_16] : memref<15x128xbf16, #tpu.memory_space<vmem>>, vector<1x128xbf16>
    %27 = vector.shape_cast %26 : vector<1x128xbf16> to vector<128xbf16>
    %cst_17 = arith.constant dense<0.000000e+00> : vector<8x128xf32>
    %28 = tpu.matmul %23, %25, %cst_17 {dimension_numbers = #tpu.dot_dimension_numbers<[1], [0], [0], [1], [0, 0, 1, 1], [], []>} : vector<8x128xbf16>, vector<128x128xbf16>, vector<8x128xf32> -> vector<8x128xf32>
    %29 = arith.truncf %28 : vector<8x128xf32> to vector<8x128xbf16>
    %30 = vector.shape_cast %27 : vector<128xbf16> to vector<1x128xbf16>
    %31 = vector.broadcast %30 : vector<1x128xbf16> to vector<8x128xbf16>
    %32 = arith.addf %29, %31 : vector<8x128xbf16>
    %cst_18 = arith.constant 0.000000e+00 : bf16
    %33 = vector.broadcast %cst_18 : bf16 to vector<8x128xbf16>
    %34 = arith.maximumf %32, %33 : vector<8x128xbf16>
    %c3 = arith.constant 3 : index
    %c0_19 = arith.constant 0 : index
    %c0_20 = arith.constant 0 : index
    %35 = vector.load %arg2[%c3, %c0_19, %c0_20] : memref<15x128x128xbf16, #tpu.memory_space<vmem>>, vector<1x128x128xbf16>
    %36 = vector.shape_cast %35 : vector<1x128x128xbf16> to vector<128x128xbf16>
    %c3_21 = arith.constant 3 : index
    %c0_22 = arith.constant 0 : index
    %37 = vector.load %arg3[%c3_21, %c0_22] : memref<15x128xbf16, #tpu.memory_space<vmem>>, vector<1x128xbf16>
    %38 = vector.shape_cast %37 : vector<1x128xbf16> to vector<128xbf16>
    %cst_23 = arith.constant dense<0.000000e+00> : vector<8x128xf32>
    %39 = tpu.matmul %34, %36, %cst_23 {dimension_numbers = #tpu.dot_dimension_numbers<[1], [0], [0], [1], [0, 0, 1, 1], [], []>} : vector<8x128xbf16>, vector<128x128xbf16>, vector<8x128xf32> -> vector<8x128xf32>
    %40 = arith.truncf %39 : vector<8x128xf32> to vector<8x128xbf16>
    %41 = vector.shape_cast %38 : vector<128xbf16> to vector<1x128xbf16>
    %42 = vector.broadcast %41 : vector<1x128xbf16> to vector<8x128xbf16>
    %43 = arith.addf %40, %42 : vector<8x128xbf16>
    %cst_24 = arith.constant 0.000000e+00 : bf16
    %44 = vector.broadcast %cst_24 : bf16 to vector<8x128xbf16>
    %45 = arith.maximumf %43, %44 : vector<8x128xbf16>
    %c4 = arith.constant 4 : index
    %c0_25 = arith.constant 0 : index
    %c0_26 = arith.constant 0 : index
    %46 = vector.load %arg2[%c4, %c0_25, %c0_26] : memref<15x128x128xbf16, #tpu.memory_space<vmem>>, vector<1x128x128xbf16>
    %47 = vector.shape_cast %46 : vector<1x128x128xbf16> to vector<128x128xbf16>
    %c4_27 = arith.constant 4 : index
    %c0_28 = arith.constant 0 : index
    %48 = vector.load %arg3[%c4_27, %c0_28] : memref<15x128xbf16, #tpu.memory_space<vmem>>, vector<1x128xbf16>
    %49 = vector.shape_cast %48 : vector<1x128xbf16> to vector<128xbf16>
    %cst_29 = arith.constant dense<0.000000e+00> : vector<8x128xf32>
    %50 = tpu.matmul %45, %47, %cst_29 {dimension_numbers = #tpu.dot_dimension_numbers<[1], [0], [0], [1], [0, 0, 1, 1], [], []>} : vector<8x128xbf16>, vector<128x128xbf16>, vector<8x128xf32> -> vector<8x128xf32>
    %51 = arith.truncf %50 : vector<8x128xf32> to vector<8x128xbf16>
    %52 = vector.shape_cast %49 : vector<128xbf16> to vector<1x128xbf16>
    %53 = vector.broadcast %52 : vector<1x128xbf16> to vector<8x128xbf16>
    %54 = arith.addf %51, %53 : vector<8x128xbf16>
    %cst_30 = arith.constant 0.000000e+00 : bf16
    %55 = vector.broadcast %cst_30 : bf16 to vector<8x128xbf16>
    %56 = arith.maximumf %54, %55 : vector<8x128xbf16>
    %c5 = arith.constant 5 : index
    %c0_31 = arith.constant 0 : index
    %c0_32 = arith.constant 0 : index
    %57 = vector.load %arg2[%c5, %c0_31, %c0_32] : memref<15x128x128xbf16, #tpu.memory_space<vmem>>, vector<1x128x128xbf16>
    %58 = vector.shape_cast %57 : vector<1x128x128xbf16> to vector<128x128xbf16>
    %c5_33 = arith.constant 5 : index
    %c0_34 = arith.constant 0 : index
    %59 = vector.load %arg3[%c5_33, %c0_34] : memref<15x128xbf16, #tpu.memory_space<vmem>>, vector<1x128xbf16>
    %60 = vector.shape_cast %59 : vector<1x128xbf16> to vector<128xbf16>
    %cst_35 = arith.constant dense<0.000000e+00> : vector<8x128xf32>
    %61 = tpu.matmul %56, %58, %cst_35 {dimension_numbers = #tpu.dot_dimension_numbers<[1], [0], [0], [1], [0, 0, 1, 1], [], []>} : vector<8x128xbf16>, vector<128x128xbf16>, vector<8x128xf32> -> vector<8x128xf32>
    %62 = arith.truncf %61 : vector<8x128xf32> to vector<8x128xbf16>
    %63 = vector.shape_cast %60 : vector<128xbf16> to vector<1x128xbf16>
    %64 = vector.broadcast %63 : vector<1x128xbf16> to vector<8x128xbf16>
    %65 = arith.addf %62, %64 : vector<8x128xbf16>
    %cst_36 = arith.constant 0.000000e+00 : bf16
    %66 = vector.broadcast %cst_36 : bf16 to vector<8x128xbf16>
    %67 = arith.maximumf %65, %66 : vector<8x128xbf16>
    %c6 = arith.constant 6 : index
    %c0_37 = arith.constant 0 : index
    %c0_38 = arith.constant 0 : index
    %68 = vector.load %arg2[%c6, %c0_37, %c0_38] : memref<15x128x128xbf16, #tpu.memory_space<vmem>>, vector<1x128x128xbf16>
    %69 = vector.shape_cast %68 : vector<1x128x128xbf16> to vector<128x128xbf16>
    %c6_39 = arith.constant 6 : index
    %c0_40 = arith.constant 0 : index
    %70 = vector.load %arg3[%c6_39, %c0_40] : memref<15x128xbf16, #tpu.memory_space<vmem>>, vector<1x128xbf16>
    %71 = vector.shape_cast %70 : vector<1x128xbf16> to vector<128xbf16>
    %cst_41 = arith.constant dense<0.000000e+00> : vector<8x128xf32>
    %72 = tpu.matmul %67, %69, %cst_41 {dimension_numbers = #tpu.dot_dimension_numbers<[1], [0], [0], [1], [0, 0, 1, 1], [], []>} : vector<8x128xbf16>, vector<128x128xbf16>, vector<8x128xf32> -> vector<8x128xf32>
    %73 = arith.truncf %72 : vector<8x128xf32> to vector<8x128xbf16>
    %74 = vector.shape_cast %71 : vector<128xbf16> to vector<1x128xbf16>
    %75 = vector.broadcast %74 : vector<1x128xbf16> to vector<8x128xbf16>
    %76 = arith.addf %73, %75 : vector<8x128xbf16>
    %cst_42 = arith.constant 0.000000e+00 : bf16
    %77 = vector.broadcast %cst_42 : bf16 to vector<8x128xbf16>
    %78 = arith.maximumf %76, %77 : vector<8x128xbf16>
    %c7 = arith.constant 7 : index
    %c0_43 = arith.constant 0 : index
    %c0_44 = arith.constant 0 : index
    %79 = vector.load %arg2[%c7, %c0_43, %c0_44] : memref<15x128x128xbf16, #tpu.memory_space<vmem>>, vector<1x128x128xbf16>
    %80 = vector.shape_cast %79 : vector<1x128x128xbf16> to vector<128x128xbf16>
    %c7_45 = arith.constant 7 : index
    %c0_46 = arith.constant 0 : index
    %81 = vector.load %arg3[%c7_45, %c0_46] : memref<15x128xbf16, #tpu.memory_space<vmem>>, vector<1x128xbf16>
    %82 = vector.shape_cast %81 : vector<1x128xbf16> to vector<128xbf16>
    %cst_47 = arith.constant dense<0.000000e+00> : vector<8x128xf32>
    %83 = tpu.matmul %78, %80, %cst_47 {dimension_numbers = #tpu.dot_dimension_numbers<[1], [0], [0], [1], [0, 0, 1, 1], [], []>} : vector<8x128xbf16>, vector<128x128xbf16>, vector<8x128xf32> -> vector<8x128xf32>
    %84 = arith.truncf %83 : vector<8x128xf32> to vector<8x128xbf16>
    %85 = vector.shape_cast %82 : vector<128xbf16> to vector<1x128xbf16>
    %86 = vector.broadcast %85 : vector<1x128xbf16> to vector<8x128xbf16>
    %87 = arith.addf %84, %86 : vector<8x128xbf16>
    %cst_48 = arith.constant 0.000000e+00 : bf16
    %88 = vector.broadcast %cst_48 : bf16 to vector<8x128xbf16>
    %89 = arith.maximumf %87, %88 : vector<8x128xbf16>
    %c8 = arith.constant 8 : index
    %c0_49 = arith.constant 0 : index
    %c0_50 = arith.constant 0 : index
    %90 = vector.load %arg2[%c8, %c0_49, %c0_50] : memref<15x128x128xbf16, #tpu.memory_space<vmem>>, vector<1x128x128xbf16>
    %91 = vector.shape_cast %90 : vector<1x128x128xbf16> to vector<128x128xbf16>
    %c8_51 = arith.constant 8 : index
    %c0_52 = arith.constant 0 : index
    %92 = vector.load %arg3[%c8_51, %c0_52] : memref<15x128xbf16, #tpu.memory_space<vmem>>, vector<1x128xbf16>
    %93 = vector.shape_cast %92 : vector<1x128xbf16> to vector<128xbf16>
    %cst_53 = arith.constant dense<0.000000e+00> : vector<8x128xf32>
    %94 = tpu.matmul %89, %91, %cst_53 {dimension_numbers = #tpu.dot_dimension_numbers<[1], [0], [0], [1], [0, 0, 1, 1], [], []>} : vector<8x128xbf16>, vector<128x128xbf16>, vector<8x128xf32> -> vector<8x128xf32>
    %95 = arith.truncf %94 : vector<8x128xf32> to vector<8x128xbf16>
    %96 = vector.shape_cast %93 : vector<128xbf16> to vector<1x128xbf16>
    %97 = vector.broadcast %96 : vector<1x128xbf16> to vector<8x128xbf16>
    %98 = arith.addf %95, %97 : vector<8x128xbf16>
    %cst_54 = arith.constant 0.000000e+00 : bf16
    %99 = vector.broadcast %cst_54 : bf16 to vector<8x128xbf16>
    %100 = arith.maximumf %98, %99 : vector<8x128xbf16>
    %c9 = arith.constant 9 : index
    %c0_55 = arith.constant 0 : index
    %c0_56 = arith.constant 0 : index
    %101 = vector.load %arg2[%c9, %c0_55, %c0_56] : memref<15x128x128xbf16, #tpu.memory_space<vmem>>, vector<1x128x128xbf16>
    %102 = vector.shape_cast %101 : vector<1x128x128xbf16> to vector<128x128xbf16>
    %c9_57 = arith.constant 9 : index
    %c0_58 = arith.constant 0 : index
    %103 = vector.load %arg3[%c9_57, %c0_58] : memref<15x128xbf16, #tpu.memory_space<vmem>>, vector<1x128xbf16>
    %104 = vector.shape_cast %103 : vector<1x128xbf16> to vector<128xbf16>
    %cst_59 = arith.constant dense<0.000000e+00> : vector<8x128xf32>
    %105 = tpu.matmul %100, %102, %cst_59 {dimension_numbers = #tpu.dot_dimension_numbers<[1], [0], [0], [1], [0, 0, 1, 1], [], []>} : vector<8x128xbf16>, vector<128x128xbf16>, vector<8x128xf32> -> vector<8x128xf32>
    %106 = arith.truncf %105 : vector<8x128xf32> to vector<8x128xbf16>
    %107 = vector.shape_cast %104 : vector<128xbf16> to vector<1x128xbf16>
    %108 = vector.broadcast %107 : vector<1x128xbf16> to vector<8x128xbf16>
    %109 = arith.addf %106, %108 : vector<8x128xbf16>
    %cst_60 = arith.constant 0.000000e+00 : bf16
    %110 = vector.broadcast %cst_60 : bf16 to vector<8x128xbf16>
    %111 = arith.maximumf %109, %110 : vector<8x128xbf16>
    %c10 = arith.constant 10 : index
    %c0_61 = arith.constant 0 : index
    %c0_62 = arith.constant 0 : index
    %112 = vector.load %arg2[%c10, %c0_61, %c0_62] : memref<15x128x128xbf16, #tpu.memory_space<vmem>>, vector<1x128x128xbf16>
    %113 = vector.shape_cast %112 : vector<1x128x128xbf16> to vector<128x128xbf16>
    %c10_63 = arith.constant 10 : index
    %c0_64 = arith.constant 0 : index
    %114 = vector.load %arg3[%c10_63, %c0_64] : memref<15x128xbf16, #tpu.memory_space<vmem>>, vector<1x128xbf16>
    %115 = vector.shape_cast %114 : vector<1x128xbf16> to vector<128xbf16>
    %cst_65 = arith.constant dense<0.000000e+00> : vector<8x128xf32>
    %116 = tpu.matmul %111, %113, %cst_65 {dimension_numbers = #tpu.dot_dimension_numbers<[1], [0], [0], [1], [0, 0, 1, 1], [], []>} : vector<8x128xbf16>, vector<128x128xbf16>, vector<8x128xf32> -> vector<8x128xf32>
    %117 = arith.truncf %116 : vector<8x128xf32> to vector<8x128xbf16>
    %118 = vector.shape_cast %115 : vector<128xbf16> to vector<1x128xbf16>
    %119 = vector.broadcast %118 : vector<1x128xbf16> to vector<8x128xbf16>
    %120 = arith.addf %117, %119 : vector<8x128xbf16>
    %cst_66 = arith.constant 0.000000e+00 : bf16
    %121 = vector.broadcast %cst_66 : bf16 to vector<8x128xbf16>
    %122 = arith.maximumf %120, %121 : vector<8x128xbf16>
    %c11 = arith.constant 11 : index
    %c0_67 = arith.constant 0 : index
    %c0_68 = arith.constant 0 : index
    %123 = vector.load %arg2[%c11, %c0_67, %c0_68] : memref<15x128x128xbf16, #tpu.memory_space<vmem>>, vector<1x128x128xbf16>
    %124 = vector.shape_cast %123 : vector<1x128x128xbf16> to vector<128x128xbf16>
    %c11_69 = arith.constant 11 : index
    %c0_70 = arith.constant 0 : index
    %125 = vector.load %arg3[%c11_69, %c0_70] : memref<15x128xbf16, #tpu.memory_space<vmem>>, vector<1x128xbf16>
    %126 = vector.shape_cast %125 : vector<1x128xbf16> to vector<128xbf16>
    %cst_71 = arith.constant dense<0.000000e+00> : vector<8x128xf32>
    %127 = tpu.matmul %122, %124, %cst_71 {dimension_numbers = #tpu.dot_dimension_numbers<[1], [0], [0], [1], [0, 0, 1, 1], [], []>} : vector<8x128xbf16>, vector<128x128xbf16>, vector<8x128xf32> -> vector<8x128xf32>
    %128 = arith.truncf %127 : vector<8x128xf32> to vector<8x128xbf16>
    %129 = vector.shape_cast %126 : vector<128xbf16> to vector<1x128xbf16>
    %130 = vector.broadcast %129 : vector<1x128xbf16> to vector<8x128xbf16>
    %131 = arith.addf %128, %130 : vector<8x128xbf16>
    %cst_72 = arith.constant 0.000000e+00 : bf16
    %132 = vector.broadcast %cst_72 : bf16 to vector<8x128xbf16>
    %133 = arith.maximumf %131, %132 : vector<8x128xbf16>
    %c12 = arith.constant 12 : index
    %c0_73 = arith.constant 0 : index
    %c0_74 = arith.constant 0 : index
    %134 = vector.load %arg2[%c12, %c0_73, %c0_74] : memref<15x128x128xbf16, #tpu.memory_space<vmem>>, vector<1x128x128xbf16>
    %135 = vector.shape_cast %134 : vector<1x128x128xbf16> to vector<128x128xbf16>
    %c12_75 = arith.constant 12 : index
    %c0_76 = arith.constant 0 : index
    %136 = vector.load %arg3[%c12_75, %c0_76] : memref<15x128xbf16, #tpu.memory_space<vmem>>, vector<1x128xbf16>
    %137 = vector.shape_cast %136 : vector<1x128xbf16> to vector<128xbf16>
    %cst_77 = arith.constant dense<0.000000e+00> : vector<8x128xf32>
    %138 = tpu.matmul %133, %135, %cst_77 {dimension_numbers = #tpu.dot_dimension_numbers<[1], [0], [0], [1], [0, 0, 1, 1], [], []>} : vector<8x128xbf16>, vector<128x128xbf16>, vector<8x128xf32> -> vector<8x128xf32>
    %139 = arith.truncf %138 : vector<8x128xf32> to vector<8x128xbf16>
    %140 = vector.shape_cast %137 : vector<128xbf16> to vector<1x128xbf16>
    %141 = vector.broadcast %140 : vector<1x128xbf16> to vector<8x128xbf16>
    %142 = arith.addf %139, %141 : vector<8x128xbf16>
    %cst_78 = arith.constant 0.000000e+00 : bf16
    %143 = vector.broadcast %cst_78 : bf16 to vector<8x128xbf16>
    %144 = arith.maximumf %142, %143 : vector<8x128xbf16>
    %c13 = arith.constant 13 : index
    %c0_79 = arith.constant 0 : index
    %c0_80 = arith.constant 0 : index
    %145 = vector.load %arg2[%c13, %c0_79, %c0_80] : memref<15x128x128xbf16, #tpu.memory_space<vmem>>, vector<1x128x128xbf16>
    %146 = vector.shape_cast %145 : vector<1x128x128xbf16> to vector<128x128xbf16>
    %c13_81 = arith.constant 13 : index
    %c0_82 = arith.constant 0 : index
    %147 = vector.load %arg3[%c13_81, %c0_82] : memref<15x128xbf16, #tpu.memory_space<vmem>>, vector<1x128xbf16>
    %148 = vector.shape_cast %147 : vector<1x128xbf16> to vector<128xbf16>
    %cst_83 = arith.constant dense<0.000000e+00> : vector<8x128xf32>
    %149 = tpu.matmul %144, %146, %cst_83 {dimension_numbers = #tpu.dot_dimension_numbers<[1], [0], [0], [1], [0, 0, 1, 1], [], []>} : vector<8x128xbf16>, vector<128x128xbf16>, vector<8x128xf32> -> vector<8x128xf32>
    %150 = arith.truncf %149 : vector<8x128xf32> to vector<8x128xbf16>
    %151 = vector.shape_cast %148 : vector<128xbf16> to vector<1x128xbf16>
    %152 = vector.broadcast %151 : vector<1x128xbf16> to vector<8x128xbf16>
    %153 = arith.addf %150, %152 : vector<8x128xbf16>
    %cst_84 = arith.constant 0.000000e+00 : bf16
    %154 = vector.broadcast %cst_84 : bf16 to vector<8x128xbf16>
    %155 = arith.maximumf %153, %154 : vector<8x128xbf16>
    %c14 = arith.constant 14 : index
    %c0_85 = arith.constant 0 : index
    %c0_86 = arith.constant 0 : index
    %156 = vector.load %arg2[%c14, %c0_85, %c0_86] : memref<15x128x128xbf16, #tpu.memory_space<vmem>>, vector<1x128x128xbf16>
    %157 = vector.shape_cast %156 : vector<1x128x128xbf16> to vector<128x128xbf16>
    %c14_87 = arith.constant 14 : index
    %c0_88 = arith.constant 0 : index
    %158 = vector.load %arg3[%c14_87, %c0_88] : memref<15x128xbf16, #tpu.memory_space<vmem>>, vector<1x128xbf16>
    %159 = vector.shape_cast %158 : vector<1x128xbf16> to vector<128xbf16>
    %cst_89 = arith.constant dense<0.000000e+00> : vector<8x128xf32>
    %160 = tpu.matmul %155, %157, %cst_89 {dimension_numbers = #tpu.dot_dimension_numbers<[1], [0], [0], [1], [0, 0, 1, 1], [], []>} : vector<8x128xbf16>, vector<128x128xbf16>, vector<8x128xf32> -> vector<8x128xf32>
    %161 = arith.extf %159 : vector<128xbf16> to vector<128xf32>
    %162 = vector.shape_cast %161 : vector<128xf32> to vector<1x128xf32>
    %163 = vector.broadcast %162 : vector<1x128xf32> to vector<8x128xf32>
    %164 = arith.addf %160, %163 : vector<8x128xf32>
    %165 = vector.extract_strided_slice %164 {offsets = [0, 0], sizes = [8, 8], strides = [1, 1]} : vector<8x128xf32> to vector<8x8xf32>
    %cst_90 = arith.constant 0.000000e+00 : f32
    %166 = vector.broadcast %cst_90 : f32 to vector<8x8xf32>
    %167 = arith.subf %166, %165 : vector<8x8xf32>
    %168 = math.exp %167 : vector<8x8xf32>
    %cst_91 = arith.constant 1.000000e+00 : f32
    %169 = vector.broadcast %cst_91 : f32 to vector<8x8xf32>
    %170 = arith.addf %169, %168 : vector<8x8xf32>
    %171 = tpu.reciprocal %170 {approx = true} : vector<8x8xf32> -> vector<8x8xf32>
    %c0_92 = arith.constant 0 : index
    %c0_93 = arith.constant 0 : index
    %172 = vector.load %arg4[%c0_92, %c0_93] : memref<8x8xf32, #tpu.memory_space<vmem>>, vector<8x8xf32>
    tpu.vector_store %arg4[%c0_92, %c0_93], %171 {strides = array<i32>} : memref<8x8xf32, #tpu.memory_space<vmem>>, vector<8x8xf32>,
    return
  }
  func.func @transform_0(%arg0: i32) -> (i32, i32) {
    %c0_i32 = arith.constant 0 : i32
    %c0_i32_0 = arith.constant 0 : i32
    return %arg0, %c0_i32 : i32, i32
  }
  func.func @transform_1(%arg0: i32) -> (i32, i32, i32) {
    %c0_i32 = arith.constant 0 : i32
    %c0_i32_0 = arith.constant 0 : i32
    %c0_i32_1 = arith.constant 0 : i32
    %c0_i32_2 = arith.constant 0 : i32
    return %c0_i32, %c0_i32_0, %c0_i32_1 : i32, i32, i32
  }
  func.func @transform_2(%arg0: i32) -> (i32, i32) {
    %c0_i32 = arith.constant 0 : i32
    %c0_i32_0 = arith.constant 0 : i32
    %c0_i32_1 = arith.constant 0 : i32
    return %c0_i32, %c0_i32_0 : i32, i32
  }
  func.func @transform_3(%arg0: i32) -> (i32, i32) {
    %c0_i32 = arith.constant 0 : i32
    %c0_i32_0 = arith.constant 0 : i32
    return %arg0, %c0_i32 : i32, i32
  }
}

</mosaic_0001>

<llo_original>
// kernel: tpu_custom_call.1
$region0: #{tpu_custom_call.1}
  #allocation0 [shape = 'u32[]', space=smem, size = 0x4, offset = 0x4, fixed_abs, tag = 'smem constant byte address 0x4 - core index']
  #allocation1 [shape = 'u32[72,128]{1,0:T(1,128)}', space=vmem, size = 0x9000, scoped, tag = 'internal scratch']
  %s0 = inlined_call_operand.hbm [shape: bf16[8,16], index: 0, kind: input, shape index: {}]
  %s1 = inlined_call_operand.hbm [shape: bf16[15,128,128], index: 1, kind: input, shape index: {}]
  %s2 = inlined_call_operand.hbm [shape: bf16[15,128], index: 2, kind: input, shape index: {}]
  %s3 = inlined_call_operand.hbm [shape: f32[8,8], index: 3, kind: output, shape index: {}]
  %s4 = sld [smem:[#allocation0]]
  $region34: #{tpu_custom_call.1} parent=0
    _
  %s6 = ssub.s32 1, %s4
  %s7 = scalar_select 0, %s6, %s4
  $region1: #{tpu_custom_call.1} parent=0
    #allocation2 [shape = 'u8[2048]{0}', space=vmem, size = 0x800, scoped, tag = 'input window, operand 0, single buffered']
    #allocation3 [shape = 's32[1]{0}', space=sflag, size = 0x4, scoped, tag = 'scoped memory for tpu_custom_call.1']
    #allocation4 [shape = 's32[1]{0}', space=sflag, size = 0x4, scoped, tag = 'scoped memory for tpu_custom_call.1']
    #allocation5 [shape = 'u8[491520]{0}', space=vmem, size = 0x78000, scoped, tag = 'input window, operand 1, single buffered']
    #allocation6 [shape = 's32[1]{0}', space=sflag, size = 0x4, scoped, tag = 'scoped memory for tpu_custom_call.1']
    #allocation7 [shape = 'u8[4096]{0}', space=vmem, size = 0x1000, scoped, tag = 'input window, operand 2, single buffered']
    #allocation8 [shape = 'u8[4096]{0}', space=vmem, size = 0x1000, scoped, tag = 'output window, operand 0, single buffered']
    %8 = vsyncpa [#allocation3], 0
    %9 = vsyncpa [#allocation6], 0
    %10 = vsyncpa [#allocation4], 0
    // Predicated region
    $region2: #{tpu_custom_call.1} parent=1 // pred_check
      _
    $region3: #{tpu_custom_call.1} parent=1 // pred_check_branch
      %12 = sbr.rel (0) target = $region5
    $region4: #{tpu_custom_call.1} parent=1 // pred_region
      %14 = vsyncadd [#allocation3], 0
      %s16 = sshll.u32 %s0, 4
      %s17 = int_to_ptr.hbm [resolvable:$true] %s16
      %s18 = sshll.u32 [#allocation2], 4
      %s19 = int_to_ptr.vmem [resolvable:$true] %s18
      %21 = dma.hbm_to_vmem [thread:$0]  %s17, 64, %s19, [#allocation3]
    $region5: #{tpu_custom_call.1} parent=1 // pred_fallthru
      _
    // Predicated region
    $region6: #{tpu_custom_call.1} parent=1 // pred_check
      _
    $region7: #{tpu_custom_call.1} parent=1 // pred_check_branch
      %23 = sbr.rel (0) target = $region9
    $region8: #{tpu_custom_call.1} parent=1 // pred_region
      %25 = vsyncadd [#allocation6], 0
      %s26 = sshll.u32 %s1, 4
      %s27 = int_to_ptr.hbm [resolvable:$true] %s26
      %s28 = sshll.u32 [#allocation5], 4
      %s29 = int_to_ptr.vmem [resolvable:$true] %s28
      %34 = dma.hbm_to_vmem [thread:$0]  %s27, 15360, %s29, [#allocation6], 64, 64, 4
    $region9: #{tpu_custom_call.1} parent=1 // pred_fallthru
      _
    // Predicated region
    $region10: #{tpu_custom_call.1} parent=1 // pred_check
      _
    $region11: #{tpu_custom_call.1} parent=1 // pred_check_branch
      %36 = sbr.rel (0) target = $region13
    $region12: #{tpu_custom_call.1} parent=1 // pred_region
      %38 = vsyncadd [#allocation6], 0
      %s39 = sshll.u32 %s2, 4
      %s40 = int_to_ptr.hbm [resolvable:$true] %s39
      %s41 = sshll.u32 [#allocation7], 4
      %s42 = int_to_ptr.vmem [resolvable:$true] %s41
      %47 = dma.hbm_to_vmem [thread:$0]  %s40, 128, %s42, [#allocation6], 64, 64, 4
    $region13: #{tpu_custom_call.1} parent=1 // pred_fallthru
      _
    // Predicated region
    $region14: #{tpu_custom_call.1} parent=1 // pred_check
      _
    $region15: #{tpu_custom_call.1} parent=1 // pred_check_branch
      %49 = sbr.rel (0) target = $region17
    $region16: #{tpu_custom_call.1} parent=1 // pred_region
      %51 = dma.done [#allocation3], 64
    $region17: #{tpu_custom_call.1} parent=1 // pred_fallthru
      _
    // Predicated region
    $region18: #{tpu_custom_call.1} parent=1 // pred_check
      _
    $region19: #{tpu_custom_call.1} parent=1 // pred_check_branch
      %53 = sbr.rel (0) target = $region21
    $region20: #{tpu_custom_call.1} parent=1 // pred_region
      %55 = dma.done [#allocation6], 15360
    $region21: #{tpu_custom_call.1} parent=1 // pred_fallthru
      _
    // Predicated region
    $region22: #{tpu_custom_call.1} parent=1 // pred_check
      _
    $region23: #{tpu_custom_call.1} parent=1 // pred_check_branch
      %57 = sbr.rel (0) target = $region25
    $region24: #{tpu_custom_call.1} parent=1 // pred_region
      %59 = dma.done [#allocation6], 128
    $region25: #{tpu_custom_call.1} parent=1 // pred_fallthru
      _
    %v61 = vld [vmem:[#allocation2] sm:$0xf]
    %v62 = vld [vmem:[#allocation5] sm:$0xf]
    %v63 = vld [vmem:[#allocation5 + $0x4] sm:$0xf]
    %v64 = vld [vmem:[#allocation7] sm:$0x1]
    %v67 = vunpack.c.l.b16 %v62
    %v68 = vunpack.c.l.b16 %v63
    %v69 = vpack.c.b16 %v68, %v67
    %vm71 = vcmask 130048
    %v73 = vsel %vm71, %v61, 0
    %75 = vmatpush.bf16.msra.mxu0 0
    %76 = vmatpush.bf16.msra.mxu0 0
    %77 = vmatpush.bf16.msra.mxu0 0
    %78 = vmatpush.bf16.msra.mxu0 0
    %79 = vmatpush.bf16.msra.mxu0 0
    %80 = vmatpush.bf16.msra.mxu0 0
    %81 = vmatpush.bf16.msra.mxu0 0
    %82 = vmatpush.bf16.msra.mxu0 %v69
    %83 = vmatmul.bf16.gmra.mxu0 %v73
    %v84 = vpop.f32.mrf.mxu0
    %v85 = vadd.f32 0.0, %v84
    %v86 = vpop.f32.mrf.mxu0
    %87 = vdwg.mxu0
    %v88 = vpack.c.bf16 %v85, %v85
    %v90 = vpack.i.b16 %v64, %v64
    %v92 = vperm.slane %v90, 0
    %v93 = vunpack.c.l.bf16 %v88
    %v94 = vunpack.c.l.bf16 %v92
    %v95 = vadd.f32 %v93, %v94
    %v96 = vpack.c.bf16 %v95, %v95
    %v97 = vunpack.c.l.bf16 %v96
    %v98 = vmax.f32 %v97, 0.0
    %v99 = vpack.c.bf16 %v98, %v98
    %s100 = scalar_lea.vmem [#allocation5], 64
    %v101 = vld [vmem:[%s100] sm:$0xf]
    %v102 = vld [vmem:[%s100 + $0x4] sm:$0xf]
    %v103 = vld [vmem:[%s100 + $0x8] sm:$0xf]
    %v104 = vld [vmem:[%s100 + $0xc] sm:$0xf]
    %v105 = vld [vmem:[%s100 + $0x10] sm:$0xf]
    %v106 = vld [vmem:[%s100 + $0x14] sm:$0xf]
    %v107 = vld [vmem:[%s100 + $0x18] sm:$0xf]
    %v108 = vld [vmem:[%s100 + $0x1c] sm:$0xf]
    %v109 = vld [vmem:[%s100 + $0x20] sm:$0xf]
    %v110 = vld [vmem:[%s100 + $0x24] sm:$0xf]
    %v111 = vld [vmem:[%s100 + $0x28] sm:$0xf]
    %v112 = vld [vmem:[%s100 + $0x2c] sm:$0xf]
    %v113 = vld [vmem:[%s100 + $0x30] sm:$0xf]
    %v114 = vld [vmem:[%s100 + $0x34] sm:$0xf]
    %v115 = vld [vmem:[%s100 + $0x38] sm:$0xf]
    %v116 = vld [vmem:[%s100 + $0x3c] sm:$0xf]
    %v133 = vunpack.c.l.b16 %v101
    %v134 = vunpack.c.l.b16 %v102
    %v135 = vunpack.c.l.b16 %v103
    %v136 = vunpack.c.l.b16 %v104
    %v137 = vunpack.c.l.b16 %v105
    %v138 = vunpack.c.l.b16 %v106
    %v139 = vunpack.c.l.b16 %v107
    %v140 = vunpack.c.l.b16 %v108
    %v141 = vunpack.c.l.b16 %v109
    %v142 = vunpack.c.l.b16 %v110
    %v143 = vunpack.c.l.b16 %v111
    %v144 = vunpack.c.l.b16 %v112
    %v145 = vunpack.c.l.b16 %v113
    %v146 = vunpack.c.l.b16 %v114
    %v147 = vunpack.c.l.b16 %v115
    %v148 = vunpack.c.l.b16 %v116
    %v149 = vpack.c.b16 %v134, %v133
    %v150 = vpack.c.b16 %v136, %v135
    %v151 = vpack.c.b16 %v138, %v137
    %v152 = vpack.c.b16 %v140, %v139
    %v153 = vpack.c.b16 %v142, %v141
    %v154 = vpack.c.b16 %v144, %v143
    %v155 = vpack.c.b16 %v146, %v145
    %v156 = vpack.c.b16 %v148, %v147
    %165 = vmatpush.bf16.msra.mxu0 %v156
    %166 = vmatpush.bf16.msra.mxu0 %v155
    %167 = vmatpush.bf16.msra.mxu0 %v154
    %168 = vmatpush.bf16.msra.mxu0 %v153
    %169 = vmatpush.bf16.msra.mxu0 %v152
    %170 = vmatpush.bf16.msra.mxu0 %v151
    %171 = vmatpush.bf16.msra.mxu0 %v150
    %172 = vmatpush.bf16.msra.mxu0 %v149
    %173 = vmatmul.bf16.gmra.mxu0 %v99
    %v174 = vpop.f32.mrf.mxu0
    %v175 = vadd.f32 0.0, %v174
    %v176 = vpop.f32.mrf.mxu0
    %177 = vdwg.mxu0
    %v178 = vpack.c.bf16 %v175, %v175
    %v179 = vshrl.u32 %v64, 16
    %v180 = vpack.i.b16 %v179, %v179
    %v182 = vperm.slane %v180, 0
    %v183 = vunpack.c.l.bf16 %v178
    %v184 = vunpack.c.l.bf16 %v182
    %v185 = vadd.f32 %v183, %v184
    %v186 = vpack.c.bf16 %v185, %v185
    %v187 = vunpack.c.l.bf16 %v186
    %v188 = vmax.f32 %v187, 0.0
    %v189 = vpack.c.bf16 %v188, %v188
    %s190 = scalar_lea.vmem [#allocation5], 128
    %v191 = vld [vmem:[%s190] sm:$0xf]
    %v192 = vld [vmem:[%s190 + $0x4] sm:$0xf]
    %v193 = vld [vmem:[%s190 + $0x8] sm:$0xf]
    %v194 = vld [vmem:[%s190 + $0xc] sm:$0xf]
    %v195 = vld [vmem:[%s190 + $0x10] sm:$0xf]
    %v196 = vld [vmem:[%s190 + $0x14] sm:$0xf]
    %v197 = vld [vmem:[%s190 + $0x18] sm:$0xf]
    %v198 = vld [vmem:[%s190 + $0x1c] sm:$0xf]
    %v199 = vld [vmem:[%s190 + $0x20] sm:$0xf]
    %v200 = vld [vmem:[%s190 + $0x24] sm:$0xf]
    %v201 = vld [vmem:[%s190 + $0x28] sm:$0xf]
    %v202 = vld [vmem:[%s190 + $0x2c] sm:$0xf]
    %v203 = vld [vmem:[%s190 + $0x30] sm:$0xf]
    %v204 = vld [vmem:[%s190 + $0x34] sm:$0xf]
    %v205 = vld [vmem:[%s190 + $0x38] sm:$0xf]
    %v206 = vld [vmem:[%s190 + $0x3c] sm:$0xf]
    %v207 = vld [vmem:[#allocation7] sm:$0x2]
    %v224 = vunpack.c.l.b16 %v191
    %v225 = vunpack.c.l.b16 %v192
    %v226 = vunpack.c.l.b16 %v193
    %v227 = vunpack.c.l.b16 %v194
    %v228 = vunpack.c.l.b16 %v195
    %v229 = vunpack.c.l.b16 %v196
    %v230 = vunpack.c.l.b16 %v197
    %v231 = vunpack.c.l.b16 %v198
    %v232 = vunpack.c.l.b16 %v199
    %v233 = vunpack.c.l.b16 %v200
    %v234 = vunpack.c.l.b16 %v201
    %v235 = vunpack.c.l.b16 %v202
    %v236 = vunpack.c.l.b16 %v203
    %v237 = vunpack.c.l.b16 %v204
    %v238 = vunpack.c.l.b16 %v205
    %v239 = vunpack.c.l.b16 %v206
    %v240 = vpack.c.b16 %v225, %v224
    %v241 = vpack.c.b16 %v227, %v226
    %v242 = vpack.c.b16 %v229, %v228
    %v243 = vpack.c.b16 %v231, %v230
    %v244 = vpack.c.b16 %v233, %v232
    %v245 = vpack.c.b16 %v235, %v234
    %v246 = vpack.c.b16 %v237, %v236
    %v247 = vpack.c.b16 %v239, %v238
    %256 = vmatpush.bf16.msra.mxu0 %v247
    %257 = vmatpush.bf16.msra.mxu0 %v246
    %258 = vmatpush.bf16.msra.mxu0 %v245
    %259 = vmatpush.bf16.msra.mxu0 %v244
    %260 = vmatpush.bf16.msra.mxu0 %v243
    %261 = vmatpush.bf16.msra.mxu0 %v242
    %262 = vmatpush.bf16.msra.mxu0 %v241
    %263 = vmatpush.bf16.msra.mxu0 %v240
    %264 = vmatmul.bf16.gmra.mxu0 %v189
    %v265 = vpop.f32.mrf.mxu0
    %v266 = vadd.f32 0.0, %v265
    %v267 = vpop.f32.mrf.mxu0
    %268 = vdwg.mxu0
    %v269 = vpack.c.bf16 %v266, %v266
    %v271 = vpack.i.b16 %v207, %v207
    %v273 = vperm.slane %v271, 1
    %v274 = vunpack.c.l.bf16 %v269
    %v275 = vunpack.c.l.bf16 %v273
    %v276 = vadd.f32 %v274, %v275
    %v277 = vpack.c.bf16 %v276, %v276
    %v278 = vunpack.c.l.bf16 %v277
    %v279 = vmax.f32 %v278, 0.0
    %v280 = vpack.c.bf16 %v279, %v279
    %s281 = scalar_lea.vmem [#allocation5], 192
    %v282 = vld [vmem:[%s281] sm:$0xf]
    %v283 = vld [vmem:[%s281 + $0x4] sm:$0xf]
    %v284 = vld [vmem:[%s281 + $0x8] sm:$0xf]
    %v285 = vld [vmem:[%s281 + $0xc] sm:$0xf]
    %v286 = vld [vmem:[%s281 + $0x10] sm:$0xf]
    %v287 = vld [vmem:[%s281 + $0x14] sm:$0xf]
    %v288 = vld [vmem:[%s281 + $0x18] sm:$0xf]
    %v289 = vld [vmem:[%s281 + $0x1c] sm:$0xf]
    %v290 = vld [vmem:[%s281 + $0x20] sm:$0xf]
    %v291 = vld [vmem:[%s281 + $0x24] sm:$0xf]
    %v292 = vld [vmem:[%s281 + $0x28] sm:$0xf]
    %v293 = vld [vmem:[%s281 + $0x2c] sm:$0xf]
    %v294 = vld [vmem:[%s281 + $0x30] sm:$0xf]
    %v295 = vld [vmem:[%s281 + $0x34] sm:$0xf]
    %v296 = vld [vmem:[%s281 + $0x38] sm:$0xf]
    %v297 = vld [vmem:[%s281 + $0x3c] sm:$0xf]
    %v314 = vunpack.c.l.b16 %v282
    %v315 = vunpack.c.l.b16 %v283
    %v316 = vunpack.c.l.b16 %v284
    %v317 = vunpack.c.l.b16 %v285
    %v318 = vunpack.c.l.b16 %v286
    %v319 = vunpack.c.l.b16 %v287
    %v320 = vunpack.c.l.b16 %v288
    %v321 = vunpack.c.l.b16 %v289
    %v322 = vunpack.c.l.b16 %v290
    %v323 = vunpack.c.l.b16 %v291
    %v324 = vunpack.c.l.b16 %v292
    %v325 = vunpack.c.l.b16 %v293
    %v326 = vunpack.c.l.b16 %v294
    %v327 = vunpack.c.l.b16 %v295
    %v328 = vunpack.c.l.b16 %v296
    %v329 = vunpack.c.l.b16 %v297
    %v330 = vpack.c.b16 %v315, %v314
    %v331 = vpack.c.b16 %v317, %v316
    %v332 = vpack.c.b16 %v319, %v318
    %v333 = vpack.c.b16 %v321, %v320
    %v334 = vpack.c.b16 %v323, %v322
    %v335 = vpack.c.b16 %v325, %v324
    %v336 = vpack.c.b16 %v327, %v326
    %v337 = vpack.c.b16 %v329, %v328
    %346 = vmatpush.bf16.msra.mxu0 %v337
    %347 = vmatpush.bf16.msra.mxu0 %v336
    %348 = vmatpush.bf16.msra.mxu0 %v335
    %349 = vmatpush.bf16.msra.mxu0 %v334
    %350 = vmatpush.bf16.msra.mxu0 %v333
    %351 = vmatpush.bf16.msra.mxu0 %v332
    %352 = vmatpush.bf16.msra.mxu0 %v331
    %353 = vmatpush.bf16.msra.mxu0 %v330
    %354 = vmatmul.bf16.gmra.mxu0 %v280
    %v355 = vpop.f32.mrf.mxu0
    %v356 = vadd.f32 0.0, %v355
    %v357 = vpop.f32.mrf.mxu0
    %358 = vdwg.mxu0
    %v359 = vpack.c.bf16 %v356, %v356
    %v360 = vshrl.u32 %v207, 16
    %v361 = vpack.i.b16 %v360, %v360
    %v363 = vperm.slane %v361, 1
    %v364 = vunpack.c.l.bf16 %v359
    %v365 = vunpack.c.l.bf16 %v363
    %v366 = vadd.f32 %v364, %v365
    %v367 = vpack.c.bf16 %v366, %v366
    %v368 = vunpack.c.l.bf16 %v367
    %v369 = vmax.f32 %v368, 0.0
    %v370 = vpack.c.bf16 %v369, %v369
    %s371 = scalar_lea.vmem [#allocation5], 256
    %v372 = vld [vmem:[%s371] sm:$0xf]
    %v373 = vld [vmem:[%s371 + $0x4] sm:$0xf]
    %v374 = vld [vmem:[%s371 + $0x8] sm:$0xf]
    %v375 = vld [vmem:[%s371 + $0xc] sm:$0xf]
    %v376 = vld [vmem:[%s371 + $0x10] sm:$0xf]
    %v377 = vld [vmem:[%s371 + $0x14] sm:$0xf]
    %v378 = vld [vmem:[%s371 + $0x18] sm:$0xf]
    %v379 = vld [vmem:[%s371 + $0x1c] sm:$0xf]
    %v380 = vld [vmem:[%s371 + $0x20] sm:$0xf]
    %v381 = vld [vmem:[%s371 + $0x24] sm:$0xf]
    %v382 = vld [vmem:[%s371 + $0x28] sm:$0xf]
    %v383 = vld [vmem:[%s371 + $0x2c] sm:$0xf]
    %v384 = vld [vmem:[%s371 + $0x30] sm:$0xf]
    %v385 = vld [vmem:[%s371 + $0x34] sm:$0xf]
    %v386 = vld [vmem:[%s371 + $0x38] sm:$0xf]
    %v387 = vld [vmem:[%s371 + $0x3c] sm:$0xf]
    %v388 = vld [vmem:[#allocation7] sm:$0x4]
    %v405 = vunpack.c.l.b16 %v372
    %v406 = vunpack.c.l.b16 %v373
    %v407 = vunpack.c.l.b16 %v374
    %v408 = vunpack.c.l.b16 %v375
    %v409 = vunpack.c.l.b16 %v376
    %v410 = vunpack.c.l.b16 %v377
    %v411 = vunpack.c.l.b16 %v378
    %v412 = vunpack.c.l.b16 %v379
    %v413 = vunpack.c.l.b16 %v380
    %v414 = vunpack.c.l.b16 %v381
    %v415 = vunpack.c.l.b16 %v382
    %v416 = vunpack.c.l.b16 %v383
    %v417 = vunpack.c.l.b16 %v384
    %v418 = vunpack.c.l.b16 %v385
    %v419 = vunpack.c.l.b16 %v386
    %v420 = vunpack.c.l.b16 %v387
    %v421 = vpack.c.b16 %v406, %v405
    %v422 = vpack.c.b16 %v408, %v407
    %v423 = vpack.c.b16 %v410, %v409
    %v424 = vpack.c.b16 %v412, %v411
    %v425 = vpack.c.b16 %v414, %v413
    %v426 = vpack.c.b16 %v416, %v415
    %v427 = vpack.c.b16 %v418, %v417
    %v428 = vpack.c.b16 %v420, %v419
    %437 = vmatpush.bf16.msra.mxu0 %v428
    %438 = vmatpush.bf16.msra.mxu0 %v427
    %439 = vmatpush.bf16.msra.mxu0 %v426
    %440 = vmatpush.bf16.msra.mxu0 %v425
    %441 = vmatpush.bf16.msra.mxu0 %v424
    %442 = vmatpush.bf16.msra.mxu0 %v423
    %443 = vmatpush.bf16.msra.mxu0 %v422
    %444 = vmatpush.bf16.msra.mxu0 %v421
    %445 = vmatmul.bf16.gmra.mxu0 %v370
    %v446 = vpop.f32.mrf.mxu0
    %v447 = vadd.f32 0.0, %v446
    %v448 = vpop.f32.mrf.mxu0
    %449 = vdwg.mxu0
    %v450 = vpack.c.bf16 %v447, %v447
    %v452 = vpack.i.b16 %v388, %v388
    %v454 = vperm.slane %v452, 2
    %v455 = vunpack.c.l.bf16 %v450
    %v456 = vunpack.c.l.bf16 %v454
    %v457 = vadd.f32 %v455, %v456
    %v458 = vpack.c.bf16 %v457, %v457
    %v459 = vunpack.c.l.bf16 %v458
    %v460 = vmax.f32 %v459, 0.0
    %v461 = vpack.c.bf16 %v460, %v460
    %s462 = scalar_lea.vmem [#allocation5], 320
    %v463 = vld [vmem:[%s462] sm:$0xf]
    %v464 = vld [vmem:[%s462 + $0x4] sm:$0xf]
    %v465 = vld [vmem:[%s462 + $0x8] sm:$0xf]
    %v466 = vld [vmem:[%s462 + $0xc] sm:$0xf]
    %v467 = vld [vmem:[%s462 + $0x10] sm:$0xf]
    %v468 = vld [vmem:[%s462 + $0x14] sm:$0xf]
    %v469 = vld [vmem:[%s462 + $0x18] sm:$0xf]
    %v470 = vld [vmem:[%s462 + $0x1c] sm:$0xf]
    %v471 = vld [vmem:[%s462 + $0x20] sm:$0xf]
    %v472 = vld [vmem:[%s462 + $0x24] sm:$0xf]
    %v473 = vld [vmem:[%s462 + $0x28] sm:$0xf]
    %v474 = vld [vmem:[%s462 + $0x2c] sm:$0xf]
    %v475 = vld [vmem:[%s462 + $0x30] sm:$0xf]
    %v476 = vld [vmem:[%s462 + $0x34] sm:$0xf]
    %v477 = vld [vmem:[%s462 + $0x38] sm:$0xf]
    %v478 = vld [vmem:[%s462 + $0x3c] sm:$0xf]
    %v495 = vunpack.c.l.b16 %v463
    %v496 = vunpack.c.l.b16 %v464
    %v497 = vunpack.c.l.b16 %v465
    %v498 = vunpack.c.l.b16 %v466
    %v499 = vunpack.c.l.b16 %v467
    %v500 = vunpack.c.l.b16 %v468
    %v501 = vunpack.c.l.b16 %v469
    %v502 = vunpack.c.l.b16 %v470
    %v503 = vunpack.c.l.b16 %v471
    %v504 = vunpack.c.l.b16 %v472
    %v505 = vunpack.c.l.b16 %v473
    %v506 = vunpack.c.l.b16 %v474
    %v507 = vunpack.c.l.b16 %v475
    %v508 = vunpack.c.l.b16 %v476
    %v509 = vunpack.c.l.b16 %v477
    %v510 = vunpack.c.l.b16 %v478
    %v511 = vpack.c.b16 %v496, %v495
    %v512 = vpack.c.b16 %v498, %v497
    %v513 = vpack.c.b16 %v500, %v499
    %v514 = vpack.c.b16 %v502, %v501
    %v515 = vpack.c.b16 %v504, %v503
    %v516 = vpack.c.b16 %v506, %v505
    %v517 = vpack.c.b16 %v508, %v507
    %v518 = vpack.c.b16 %v510, %v509
    %527 = vmatpush.bf16.msra.mxu0 %v518
    %528 = vmatpush.bf16.msra.mxu0 %v517
    %529 = vmatpush.bf16.msra.mxu0 %v516
    %530 = vmatpush.bf16.msra.mxu0 %v515
    %531 = vmatpush.bf16.msra.mxu0 %v514
    %532 = vmatpush.bf16.msra.mxu0 %v513
    %533 = vmatpush.bf16.msra.mxu0 %v512
    %534 = vmatpush.bf16.msra.mxu0 %v511
    %535 = vmatmul.bf16.gmra.mxu0 %v461
    %v536 = vpop.f32.mrf.mxu0
    %v537 = vadd.f32 0.0, %v536
    %v538 = vpop.f32.mrf.mxu0
    %539 = vdwg.mxu0
    %v540 = vpack.c.bf16 %v537, %v537
    %v541 = vshrl.u32 %v388, 16
    %v542 = vpack.i.b16 %v541, %v541
    %v544 = vperm.slane %v542, 2
    %v545 = vunpack.c.l.bf16 %v540
    %v546 = vunpack.c.l.bf16 %v544
    %v547 = vadd.f32 %v545, %v546
    %v548 = vpack.c.bf16 %v547, %v547
    %v549 = vunpack.c.l.bf16 %v548
    %v550 = vmax.f32 %v549, 0.0
    %v551 = vpack.c.bf16 %v550, %v550
    %s552 = scalar_lea.vmem [#allocation5], 384
    %v553 = vld [vmem:[%s552] sm:$0xf]
    %v554 = vld [vmem:[%s552 + $0x4] sm:$0xf]
    %v555 = vld [vmem:[%s552 + $0x8] sm:$0xf]
    %v556 = vld [vmem:[%s552 + $0xc] sm:$0xf]
    %v557 = vld [vmem:[%s552 + $0x10] sm:$0xf]
    %v558 = vld [vmem:[%s552 + $0x14] sm:$0xf]
    %v559 = vld [vmem:[%s552 + $0x18] sm:$0xf]
    %v560 = vld [vmem:[%s552 + $0x1c] sm:$0xf]
    %v561 = vld [vmem:[%s552 + $0x20] sm:$0xf]
    %v562 = vld [vmem:[%s552 + $0x24] sm:$0xf]
    %v563 = vld [vmem:[%s552 + $0x28] sm:$0xf]
    %v564 = vld [vmem:[%s552 + $0x2c] sm:$0xf]
    %v565 = vld [vmem:[%s552 + $0x30] sm:$0xf]
    %v566 = vld [vmem:[%s552 + $0x34] sm:$0xf]
    %v567 = vld [vmem:[%s552 + $0x38] sm:$0xf]
    %v568 = vld [vmem:[%s552 + $0x3c] sm:$0xf]
    %v569 = vld [vmem:[#allocation7] sm:$0x8]
    %v586 = vunpack.c.l.b16 %v553
    %v587 = vunpack.c.l.b16 %v554
    %v588 = vunpack.c.l.b16 %v555
    %v589 = vunpack.c.l.b16 %v556
    %v590 = vunpack.c.l.b16 %v557
    %v591 = vunpack.c.l.b16 %v558
    %v592 = vunpack.c.l.b16 %v559
    %v593 = vunpack.c.l.b16 %v560
    %v594 = vunpack.c.l.b16 %v561
    %v595 = vunpack.c.l.b16 %v562
    %v596 = vunpack.c.l.b16 %v563
    %v597 = vunpack.c.l.b16 %v564
    %v598 = vunpack.c.l.b16 %v565
    %v599 = vunpack.c.l.b16 %v566
    %v600 = vunpack.c.l.b16 %v567
    %v601 = vunpack.c.l.b16 %v568
    %v602 = vpack.c.b16 %v587, %v586
    %v603 = vpack.c.b16 %v589, %v588
    %v604 = vpack.c.b16 %v591, %v590
    %v605 = vpack.c.b16 %v593, %v592
    %v606 = vpack.c.b16 %v595, %v594
    %v607 = vpack.c.b16 %v597, %v596
    %v608 = vpack.c.b16 %v599, %v598
    %v609 = vpack.c.b16 %v601, %v600
    %618 = vmatpush.bf16.msra.mxu0 %v609
    %619 = vmatpush.bf16.msra.mxu0 %v608
    %620 = vmatpush.bf16.msra.mxu0 %v607
    %621 = vmatpush.bf16.msra.mxu0 %v606
    %622 = vmatpush.bf16.msra.mxu0 %v605
    %623 = vmatpush.bf16.msra.mxu0 %v604
    %624 = vmatpush.bf16.msra.mxu0 %v603
    %625 = vmatpush.bf16.msra.mxu0 %v602
    %626 = vmatmul.bf16.gmra.mxu0 %v551
    %v627 = vpop.f32.mrf.mxu0
    %v628 = vadd.f32 0.0, %v627
    %v629 = vpop.f32.mrf.mxu0
    %630 = vdwg.mxu0
    %v631 = vpack.c.bf16 %v628, %v628
    %v633 = vpack.i.b16 %v569, %v569
    %v635 = vperm.slane %v633, 3
    %v636 = vunpack.c.l.bf16 %v631
    %v637 = vunpack.c.l.bf16 %v635
    %v638 = vadd.f32 %v636, %v637
    %v639 = vpack.c.bf16 %v638, %v638
    %v640 = vunpack.c.l.bf16 %v639
    %v641 = vmax.f32 %v640, 0.0
    %v642 = vpack.c.bf16 %v641, %v641
    %s643 = scalar_lea.vmem [#allocation5], 448
    %v644 = vld [vmem:[%s643] sm:$0xf]
    %v645 = vld [vmem:[%s643 + $0x4] sm:$0xf]
    %v646 = vld [vmem:[%s643 + $0x8] sm:$0xf]
    %v647 = vld [vmem:[%s643 + $0xc] sm:$0xf]
    %v648 = vld [vmem:[%s643 + $0x10] sm:$0xf]
    %v649 = vld [vmem:[%s643 + $0x14] sm:$0xf]
    %v650 = vld [vmem:[%s643 + $0x18] sm:$0xf]
    %v651 = vld [vmem:[%s643 + $0x1c] sm:$0xf]
    %v652 = vld [vmem:[%s643 + $0x20] sm:$0xf]
    %v653 = vld [vmem:[%s643 + $0x24] sm:$0xf]
    %v654 = vld [vmem:[%s643 + $0x28] sm:$0xf]
    %v655 = vld [vmem:[%s643 + $0x2c] sm:$0xf]
    %v656 = vld [vmem:[%s643 + $0x30] sm:$0xf]
    %v657 = vld [vmem:[%s643 + $0x34] sm:$0xf]
    %v658 = vld [vmem:[%s643 + $0x38] sm:$0xf]
    %v659 = vld [vmem:[%s643 + $0x3c] sm:$0xf]
    %v676 = vunpack.c.l.b16 %v644
    %v677 = vunpack.c.l.b16 %v645
    %v678 = vunpack.c.l.b16 %v646
    %v679 = vunpack.c.l.b16 %v647
    %v680 = vunpack.c.l.b16 %v648
    %v681 = vunpack.c.l.b16 %v649
    %v682 = vunpack.c.l.b16 %v650
    %v683 = vunpack.c.l.b16 %v651
    %v684 = vunpack.c.l.b16 %v652
    %v685 = vunpack.c.l.b16 %v653
    %v686 = vunpack.c.l.b16 %v654
    %v687 = vunpack.c.l.b16 %v655
    %v688 = vunpack.c.l.b16 %v656
    %v689 = vunpack.c.l.b16 %v657
    %v690 = vunpack.c.l.b16 %v658
    %v691 = vunpack.c.l.b16 %v659
    %v692 = vpack.c.b16 %v677, %v676
    %v693 = vpack.c.b16 %v679, %v678
    %v694 = vpack.c.b16 %v681, %v680
    %v695 = vpack.c.b16 %v683, %v682
    %v696 = vpack.c.b16 %v685, %v684
    %v697 = vpack.c.b16 %v687, %v686
    %v698 = vpack.c.b16 %v689, %v688
    %v699 = vpack.c.b16 %v691, %v690
    %708 = vmatpush.bf16.msra.mxu0 %v699
    %709 = vmatpush.bf16.msra.mxu0 %v698
    %710 = vmatpush.bf16.msra.mxu0 %v697
    %711 = vmatpush.bf16.msra.mxu0 %v696
    %712 = vmatpush.bf16.msra.mxu0 %v695
    %713 = vmatpush.bf16.msra.mxu0 %v694
    %714 = vmatpush.bf16.msra.mxu0 %v693
    %715 = vmatpush.bf16.msra.mxu0 %v692
    %716 = vmatmul.bf16.gmra.mxu0 %v642
    %v717 = vpop.f32.mrf.mxu0
    %v718 = vadd.f32 0.0, %v717
    %v719 = vpop.f32.mrf.mxu0
    %720 = vdwg.mxu0
    %v721 = vpack.c.bf16 %v718, %v718
    %v722 = vshrl.u32 %v569, 16
    %v723 = vpack.i.b16 %v722, %v722
    %v725 = vperm.slane %v723, 3
    %v726 = vunpack.c.l.bf16 %v721
    %v727 = vunpack.c.l.bf16 %v725
    %v728 = vadd.f32 %v726, %v727
    %v729 = vpack.c.bf16 %v728, %v728
    %v730 = vunpack.c.l.bf16 %v729
    %v731 = vmax.f32 %v730, 0.0
    %v732 = vpack.c.bf16 %v731, %v731
    %s733 = scalar_lea.vmem [#allocation5], 512
    %v734 = vld [vmem:[%s733] sm:$0xf]
    %v735 = vld [vmem:[%s733 + $0x4] sm:$0xf]
    %v736 = vld [vmem:[%s733 + $0x8] sm:$0xf]
    %v737 = vld [vmem:[%s733 + $0xc] sm:$0xf]
    %v738 = vld [vmem:[%s733 + $0x10] sm:$0xf]
    %v739 = vld [vmem:[%s733 + $0x14] sm:$0xf]
    %v740 = vld [vmem:[%s733 + $0x18] sm:$0xf]
    %v741 = vld [vmem:[%s733 + $0x1c] sm:$0xf]
    %v742 = vld [vmem:[%s733 + $0x20] sm:$0xf]
    %v743 = vld [vmem:[%s733 + $0x24] sm:$0xf]
    %v744 = vld [vmem:[%s733 + $0x28] sm:$0xf]
    %v745 = vld [vmem:[%s733 + $0x2c] sm:$0xf]
    %v746 = vld [vmem:[%s733 + $0x30] sm:$0xf]
    %v747 = vld [vmem:[%s733 + $0x34] sm:$0xf]
    %v748 = vld [vmem:[%s733 + $0x38] sm:$0xf]
    %v749 = vld [vmem:[%s733 + $0x3c] sm:$0xf]
    %v750 = vld [vmem:[#allocation7 + $0x4] sm:$0x1]
    %v767 = vunpack.c.l.b16 %v734
    %v768 = vunpack.c.l.b16 %v735
    %v769 = vunpack.c.l.b16 %v736
    %v770 = vunpack.c.l.b16 %v737
    %v771 = vunpack.c.l.b16 %v738
    %v772 = vunpack.c.l.b16 %v739
    %v773 = vunpack.c.l.b16 %v740
    %v774 = vunpack.c.l.b16 %v741
    %v775 = vunpack.c.l.b16 %v742
    %v776 = vunpack.c.l.b16 %v743
    %v777 = vunpack.c.l.b16 %v744
    %v778 = vunpack.c.l.b16 %v745
    %v779 = vunpack.c.l.b16 %v746
    %v780 = vunpack.c.l.b16 %v747
    %v781 = vunpack.c.l.b16 %v748
    %v782 = vunpack.c.l.b16 %v749
    %v783 = vpack.c.b16 %v768, %v767
    %v784 = vpack.c.b16 %v770, %v769
    %v785 = vpack.c.b16 %v772, %v771
    %v786 = vpack.c.b16 %v774, %v773
    %v787 = vpack.c.b16 %v776, %v775
    %v788 = vpack.c.b16 %v778, %v777
    %v789 = vpack.c.b16 %v780, %v779
    %v790 = vpack.c.b16 %v782, %v781
    %799 = vmatpush.bf16.msra.mxu0 %v790
    %800 = vmatpush.bf16.msra.mxu0 %v789
    %801 = vmatpush.bf16.msra.mxu0 %v788
    %802 = vmatpush.bf16.msra.mxu0 %v787
    %803 = vmatpush.bf16.msra.mxu0 %v786
    %804 = vmatpush.bf16.msra.mxu0 %v785
    %805 = vmatpush.bf16.msra.mxu0 %v784
    %806 = vmatpush.bf16.msra.mxu0 %v783
    %807 = vmatmul.bf16.gmra.mxu0 %v732
    %v808 = vpop.f32.mrf.mxu0
    %v809 = vadd.f32 0.0, %v808
    %v810 = vpop.f32.mrf.mxu0
    %811 = vdwg.mxu0
    %v812 = vpack.c.bf16 %v809, %v809
    %v814 = vpack.i.b16 %v750, %v750
    %v816 = vperm.slane %v814, 0
    %v817 = vunpack.c.l.bf16 %v812
    %v818 = vunpack.c.l.bf16 %v816
    %v819 = vadd.f32 %v817, %v818
    %v820 = vpack.c.bf16 %v819, %v819
    %v821 = vunpack.c.l.bf16 %v820
    %v822 = vmax.f32 %v821, 0.0
    %v823 = vpack.c.bf16 %v822, %v822
    %s824 = scalar_lea.vmem [#allocation5], 576
    %v825 = vld [vmem:[%s824] sm:$0xf]
    %v826 = vld [vmem:[%s824 + $0x4] sm:$0xf]
    %v827 = vld [vmem:[%s824 + $0x8] sm:$0xf]
    %v828 = vld [vmem:[%s824 + $0xc] sm:$0xf]
    %v829 = vld [vmem:[%s824 + $0x10] sm:$0xf]
    %v830 = vld [vmem:[%s824 + $0x14] sm:$0xf]
    %v831 = vld [vmem:[%s824 + $0x18] sm:$0xf]
    %v832 = vld [vmem:[%s824 + $0x1c] sm:$0xf]
    %v833 = vld [vmem:[%s824 + $0x20] sm:$0xf]
    %v834 = vld [vmem:[%s824 + $0x24] sm:$0xf]
    %v835 = vld [vmem:[%s824 + $0x28] sm:$0xf]
    %v836 = vld [vmem:[%s824 + $0x2c] sm:$0xf]
    %v837 = vld [vmem:[%s824 + $0x30] sm:$0xf]
    %v838 = vld [vmem:[%s824 + $0x34] sm:$0xf]
    %v839 = vld [vmem:[%s824 + $0x38] sm:$0xf]
    %v840 = vld [vmem:[%s824 + $0x3c] sm:$0xf]
    %v857 = vunpack.c.l.b16 %v825
    %v858 = vunpack.c.l.b16 %v826
    %v859 = vunpack.c.l.b16 %v827
    %v860 = vunpack.c.l.b16 %v828
    %v861 = vunpack.c.l.b16 %v829
    %v862 = vunpack.c.l.b16 %v830
    %v863 = vunpack.c.l.b16 %v831
    %v864 = vunpack.c.l.b16 %v832
    %v865 = vunpack.c.l.b16 %v833
    %v866 = vunpack.c.l.b16 %v834
    %v867 = vunpack.c.l.b16 %v835
    %v868 = vunpack.c.l.b16 %v836
    %v869 = vunpack.c.l.b16 %v837
    %v870 = vunpack.c.l.b16 %v838
    %v871 = vunpack.c.l.b16 %v839
    %v872 = vunpack.c.l.b16 %v840
    %v873 = vpack.c.b16 %v858, %v857
    %v874 = vpack.c.b16 %v860, %v859
    %v875 = vpack.c.b16 %v862, %v861
    %v876 = vpack.c.b16 %v864, %v863
    %v877 = vpack.c.b16 %v866, %v865
    %v878 = vpack.c.b16 %v868, %v867
    %v879 = vpack.c.b16 %v870, %v869
    %v880 = vpack.c.b16 %v872, %v871
    %889 = vmatpush.bf16.msra.mxu0 %v880
    %890 = vmatpush.bf16.msra.mxu0 %v879
    %891 = vmatpush.bf16.msra.mxu0 %v878
    %892 = vmatpush.bf16.msra.mxu0 %v877
    %893 = vmatpush.bf16.msra.mxu0 %v876
    %894 = vmatpush.bf16.msra.mxu0 %v875
    %895 = vmatpush.bf16.msra.mxu0 %v874
    %896 = vmatpush.bf16.msra.mxu0 %v873
    %897 = vmatmul.bf16.gmra.mxu0 %v823
    %v898 = vpop.f32.mrf.mxu0
    %v899 = vadd.f32 0.0, %v898
    %v900 = vpop.f32.mrf.mxu0
    %901 = vdwg.mxu0
    %v902 = vpack.c.bf16 %v899, %v899
    %v903 = vshrl.u32 %v750, 16
    %v904 = vpack.i.b16 %v903, %v903
    %v906 = vperm.slane %v904, 0
    %v907 = vunpack.c.l.bf16 %v902
    %v908 = vunpack.c.l.bf16 %v906
    %v909 = vadd.f32 %v907, %v908
    %v910 = vpack.c.bf16 %v909, %v909
    %v911 = vunpack.c.l.bf16 %v910
    %v912 = vmax.f32 %v911, 0.0
    %v913 = vpack.c.bf16 %v912, %v912
    %s914 = scalar_lea.vmem [#allocation5], 640
    %v915 = vld [vmem:[%s914] sm:$0xf]
    %v916 = vld [vmem:[%s914 + $0x4] sm:$0xf]
    %v917 = vld [vmem:[%s914 + $0x8] sm:$0xf]
    %v918 = vld [vmem:[%s914 + $0xc] sm:$0xf]
    %v919 = vld [vmem:[%s914 + $0x10] sm:$0xf]
    %v920 = vld [vmem:[%s914 + $0x14] sm:$0xf]
    %v921 = vld [vmem:[%s914 + $0x18] sm:$0xf]
    %v922 = vld [vmem:[%s914 + $0x1c] sm:$0xf]
    %v923 = vld [vmem:[%s914 + $0x20] sm:$0xf]
    %v924 = vld [vmem:[%s914 + $0x24] sm:$0xf]
    %v925 = vld [vmem:[%s914 + $0x28] sm:$0xf]
    %v926 = vld [vmem:[%s914 + $0x2c] sm:$0xf]
    %v927 = vld [vmem:[%s914 + $0x30] sm:$0xf]
    %v928 = vld [vmem:[%s914 + $0x34] sm:$0xf]
    %v929 = vld [vmem:[%s914 + $0x38] sm:$0xf]
    %v930 = vld [vmem:[%s914 + $0x3c] sm:$0xf]
    %v931 = vld [vmem:[#allocation7 + $0x4] sm:$0x2]
    %v948 = vunpack.c.l.b16 %v915
    %v949 = vunpack.c.l.b16 %v916
    %v950 = vunpack.c.l.b16 %v917
    %v951 = vunpack.c.l.b16 %v918
    %v952 = vunpack.c.l.b16 %v919
    %v953 = vunpack.c.l.b16 %v920
    %v954 = vunpack.c.l.b16 %v921
    %v955 = vunpack.c.l.b16 %v922
    %v956 = vunpack.c.l.b16 %v923
    %v957 = vunpack.c.l.b16 %v924
    %v958 = vunpack.c.l.b16 %v925
    %v959 = vunpack.c.l.b16 %v926
    %v960 = vunpack.c.l.b16 %v927
    %v961 = vunpack.c.l.b16 %v928
    %v962 = vunpack.c.l.b16 %v929
    %v963 = vunpack.c.l.b16 %v930
    %v964 = vpack.c.b16 %v949, %v948
    %v965 = vpack.c.b16 %v951, %v950
    %v966 = vpack.c.b16 %v953, %v952
    %v967 = vpack.c.b16 %v955, %v954
    %v968 = vpack.c.b16 %v957, %v956
    %v969 = vpack.c.b16 %v959, %v958
    %v970 = vpack.c.b16 %v961, %v960
    %v971 = vpack.c.b16 %v963, %v962
    %980 = vmatpush.bf16.msra.mxu0 %v971
    %981 = vmatpush.bf16.msra.mxu0 %v970
    %982 = vmatpush.bf16.msra.mxu0 %v969
    %983 = vmatpush.bf16.msra.mxu0 %v968
    %984 = vmatpush.bf16.msra.mxu0 %v967
    %985 = vmatpush.bf16.msra.mxu0 %v966
    %986 = vmatpush.bf16.msra.mxu0 %v965
    %987 = vmatpush.bf16.msra.mxu0 %v964
    %988 = vmatmul.bf16.gmra.mxu0 %v913
    %v989 = vpop.f32.mrf.mxu0
    %v990 = vadd.f32 0.0, %v989
    %v991 = vpop.f32.mrf.mxu0
    %992 = vdwg.mxu0
    %v993 = vpack.c.bf16 %v990, %v990
    %v995 = vpack.i.b16 %v931, %v931
    %v997 = vperm.slane %v995, 1
    %v998 = vunpack.c.l.bf16 %v993
    %v999 = vunpack.c.l.bf16 %v997
    %v1000 = vadd.f32 %v998, %v999
    %v1001 = vpack.c.bf16 %v1000, %v1000
    %v1002 = vunpack.c.l.bf16 %v1001
    %v1003 = vmax.f32 %v1002, 0.0
    %v1004 = vpack.c.bf16 %v1003, %v1003
    %s1005 = scalar_lea.vmem [#allocation5], 704
    %v1006 = vld [vmem:[%s1005] sm:$0xf]
    %v1007 = vld [vmem:[%s1005 + $0x4] sm:$0xf]
    %v1008 = vld [vmem:[%s1005 + $0x8] sm:$0xf]
    %v1009 = vld [vmem:[%s1005 + $0xc] sm:$0xf]
    %v1010 = vld [vmem:[%s1005 + $0x10] sm:$0xf]
    %v1011 = vld [vmem:[%s1005 + $0x14] sm:$0xf]
    %v1012 = vld [vmem:[%s1005 + $0x18] sm:$0xf]
    %v1013 = vld [vmem:[%s1005 + $0x1c] sm:$0xf]
    %v1014 = vld [vmem:[%s1005 + $0x20] sm:$0xf]
    %v1015 = vld [vmem:[%s1005 + $0x24] sm:$0xf]
    %v1016 = vld [vmem:[%s1005 + $0x28] sm:$0xf]
    %v1017 = vld [vmem:[%s1005 + $0x2c] sm:$0xf]
    %v1018 = vld [vmem:[%s1005 + $0x30] sm:$0xf]
    %v1019 = vld [vmem:[%s1005 + $0x34] sm:$0xf]
    %v1020 = vld [vmem:[%s1005 + $0x38] sm:$0xf]
    %v1021 = vld [vmem:[%s1005 + $0x3c] sm:$0xf]
    %v1038 = vunpack.c.l.b16 %v1006
    %v1039 = vunpack.c.l.b16 %v1007
    %v1040 = vunpack.c.l.b16 %v1008
    %v1041 = vunpack.c.l.b16 %v1009
    %v1042 = vunpack.c.l.b16 %v1010
    %v1043 = vunpack.c.l.b16 %v1011
    %v1044 = vunpack.c.l.b16 %v1012
    %v1045 = vunpack.c.l.b16 %v1013
    %v1046 = vunpack.c.l.b16 %v1014
    %v1047 = vunpack.c.l.b16 %v1015
    %v1048 = vunpack.c.l.b16 %v1016
    %v1049 = vunpack.c.l.b16 %v1017
    %v1050 = vunpack.c.l.b16 %v1018
    %v1051 = vunpack.c.l.b16 %v1019
    %v1052 = vunpack.c.l.b16 %v1020
    %v1053 = vunpack.c.l.b16 %v1021
    %v1054 = vpack.c.b16 %v1039, %v1038
    %v1055 = vpack.c.b16 %v1041, %v1040
    %v1056 = vpack.c.b16 %v1043, %v1042
    %v1057 = vpack.c.b16 %v1045, %v1044
    %v1058 = vpack.c.b16 %v1047, %v1046
    %v1059 = vpack.c.b16 %v1049, %v1048
    %v1060 = vpack.c.b16 %v1051, %v1050
    %v1061 = vpack.c.b16 %v1053, %v1052
    %1070 = vmatpush.bf16.msra.mxu0 %v1061
    %1071 = vmatpush.bf16.msra.mxu0 %v1060
    %1072 = vmatpush.bf16.msra.mxu0 %v1059
    %1073 = vmatpush.bf16.msra.mxu0 %v1058
    %1074 = vmatpush.bf16.msra.mxu0 %v1057
    %1075 = vmatpush.bf16.msra.mxu0 %v1056
    %1076 = vmatpush.bf16.msra.mxu0 %v1055
    %1077 = vmatpush.bf16.msra.mxu0 %v1054
    %1078 = vmatmul.bf16.gmra.mxu0 %v1004
    %v1079 = vpop.f32.mrf.mxu0
    %v1080 = vadd.f32 0.0, %v1079
    %v1081 = vpop.f32.mrf.mxu0
    %1082 = vdwg.mxu0
    %v1083 = vpack.c.bf16 %v1080, %v1080
    %v1084 = vshrl.u32 %v931, 16
    %v1085 = vpack.i.b16 %v1084, %v1084
    %v1087 = vperm.slane %v1085, 1
    %v1088 = vunpack.c.l.bf16 %v1083
    %v1089 = vunpack.c.l.bf16 %v1087
    %v1090 = vadd.f32 %v1088, %v1089
    %v1091 = vpack.c.bf16 %v1090, %v1090
    %v1092 = vunpack.c.l.bf16 %v1091
    %v1093 = vmax.f32 %v1092, 0.0
    %v1094 = vpack.c.bf16 %v1093, %v1093
    %s1095 = scalar_lea.vmem [#allocation5], 768
    %v1096 = vld [vmem:[%s1095] sm:$0xf]
    %v1097 = vld [vmem:[%s1095 + $0x4] sm:$0xf]
    %v1098 = vld [vmem:[%s1095 + $0x8] sm:$0xf]
    %v1099 = vld [vmem:[%s1095 + $0xc] sm:$0xf]
    %v1100 = vld [vmem:[%s1095 + $0x10] sm:$0xf]
    %v1101 = vld [vmem:[%s1095 + $0x14] sm:$0xf]
    %v1102 = vld [vmem:[%s1095 + $0x18] sm:$0xf]
    %v1103 = vld [vmem:[%s1095 + $0x1c] sm:$0xf]
    %v1104 = vld [vmem:[%s1095 + $0x20] sm:$0xf]
    %v1105 = vld [vmem:[%s1095 + $0x24] sm:$0xf]
    %v1106 = vld [vmem:[%s1095 + $0x28] sm:$0xf]
    %v1107 = vld [vmem:[%s1095 + $0x2c] sm:$0xf]
    %v1108 = vld [vmem:[%s1095 + $0x30] sm:$0xf]
    %v1109 = vld [vmem:[%s1095 + $0x34] sm:$0xf]
    %v1110 = vld [vmem:[%s1095 + $0x38] sm:$0xf]
    %v1111 = vld [vmem:[%s1095 + $0x3c] sm:$0xf]
    %v1112 = vld [vmem:[#allocation7 + $0x4] sm:$0x4]
    %v1129 = vunpack.c.l.b16 %v1096
    %v1130 = vunpack.c.l.b16 %v1097
    %v1131 = vunpack.c.l.b16 %v1098
    %v1132 = vunpack.c.l.b16 %v1099
    %v1133 = vunpack.c.l.b16 %v1100
    %v1134 = vunpack.c.l.b16 %v1101
    %v1135 = vunpack.c.l.b16 %v1102
    %v1136 = vunpack.c.l.b16 %v1103
    %v1137 = vunpack.c.l.b16 %v1104
    %v1138 = vunpack.c.l.b16 %v1105
    %v1139 = vunpack.c.l.b16 %v1106
    %v1140 = vunpack.c.l.b16 %v1107
    %v1141 = vunpack.c.l.b16 %v1108
    %v1142 = vunpack.c.l.b16 %v1109
    %v1143 = vunpack.c.l.b16 %v1110
    %v1144 = vunpack.c.l.b16 %v1111
    %v1145 = vpack.c.b16 %v1130, %v1129
    %v1146 = vpack.c.b16 %v1132, %v1131
    %v1147 = vpack.c.b16 %v1134, %v1133
    %v1148 = vpack.c.b16 %v1136, %v1135
    %v1149 = vpack.c.b16 %v1138, %v1137
    %v1150 = vpack.c.b16 %v1140, %v1139
    %v1151 = vpack.c.b16 %v1142, %v1141
    %v1152 = vpack.c.b16 %v1144, %v1143
    %1161 = vmatpush.bf16.msra.mxu0 %v1152
    %1162 = vmatpush.bf16.msra.mxu0 %v1151
    %1163 = vmatpush.bf16.msra.mxu0 %v1150
    %1164 = vmatpush.bf16.msra.mxu0 %v1149
    %1165 = vmatpush.bf16.msra.mxu0 %v1148
    %1166 = vmatpush.bf16.msra.mxu0 %v1147
    %1167 = vmatpush.bf16.msra.mxu0 %v1146
    %1168 = vmatpush.bf16.msra.mxu0 %v1145
    %1169 = vmatmul.bf16.gmra.mxu0 %v1094
    %v1170 = vpop.f32.mrf.mxu0
    %v1171 = vadd.f32 0.0, %v1170
    %v1172 = vpop.f32.mrf.mxu0
    %1173 = vdwg.mxu0
    %v1174 = vpack.c.bf16 %v1171, %v1171
    %v1176 = vpack.i.b16 %v1112, %v1112
    %v1178 = vperm.slane %v1176, 2
    %v1179 = vunpack.c.l.bf16 %v1174
    %v1180 = vunpack.c.l.bf16 %v1178
    %v1181 = vadd.f32 %v1179, %v1180
    %v1182 = vpack.c.bf16 %v1181, %v1181
    %v1183 = vunpack.c.l.bf16 %v1182
    %v1184 = vmax.f32 %v1183, 0.0
    %v1185 = vpack.c.bf16 %v1184, %v1184
    %s1186 = scalar_lea.vmem [#allocation5], 832
    %v1187 = vld [vmem:[%s1186] sm:$0xf]
    %v1188 = vld [vmem:[%s1186 + $0x4] sm:$0xf]
    %v1189 = vld [vmem:[%s1186 + $0x8] sm:$0xf]
    %v1190 = vld [vmem:[%s1186 + $0xc] sm:$0xf]
    %v1191 = vld [vmem:[%s1186 + $0x10] sm:$0xf]
    %v1192 = vld [vmem:[%s1186 + $0x14] sm:$0xf]
    %v1193 = vld [vmem:[%s1186 + $0x18] sm:$0xf]
    %v1194 = vld [vmem:[%s1186 + $0x1c] sm:$0xf]
    %v1195 = vld [vmem:[%s1186 + $0x20] sm:$0xf]
    %v1196 = vld [vmem:[%s1186 + $0x24] sm:$0xf]
    %v1197 = vld [vmem:[%s1186 + $0x28] sm:$0xf]
    %v1198 = vld [vmem:[%s1186 + $0x2c] sm:$0xf]
    %v1199 = vld [vmem:[%s1186 + $0x30] sm:$0xf]
    %v1200 = vld [vmem:[%s1186 + $0x34] sm:$0xf]
    %v1201 = vld [vmem:[%s1186 + $0x38] sm:$0xf]
    %v1202 = vld [vmem:[%s1186 + $0x3c] sm:$0xf]
    %v1219 = vunpack.c.l.b16 %v1187
    %v1220 = vunpack.c.l.b16 %v1188
    %v1221 = vunpack.c.l.b16 %v1189
    %v1222 = vunpack.c.l.b16 %v1190
    %v1223 = vunpack.c.l.b16 %v1191
    %v1224 = vunpack.c.l.b16 %v1192
    %v1225 = vunpack.c.l.b16 %v1193
    %v1226 = vunpack.c.l.b16 %v1194
    %v1227 = vunpack.c.l.b16 %v1195
    %v1228 = vunpack.c.l.b16 %v1196
    %v1229 = vunpack.c.l.b16 %v1197
    %v1230 = vunpack.c.l.b16 %v1198
    %v1231 = vunpack.c.l.b16 %v1199
    %v1232 = vunpack.c.l.b16 %v1200
    %v1233 = vunpack.c.l.b16 %v1201
    %v1234 = vunpack.c.l.b16 %v1202
    %v1235 = vpack.c.b16 %v1220, %v1219
    %v1236 = vpack.c.b16 %v1222, %v1221
    %v1237 = vpack.c.b16 %v1224, %v1223
    %v1238 = vpack.c.b16 %v1226, %v1225
    %v1239 = vpack.c.b16 %v1228, %v1227
    %v1240 = vpack.c.b16 %v1230, %v1229
    %v1241 = vpack.c.b16 %v1232, %v1231
    %v1242 = vpack.c.b16 %v1234, %v1233
    %1251 = vmatpush.bf16.msra.mxu0 %v1242
    %1252 = vmatpush.bf16.msra.mxu0 %v1241
    %1253 = vmatpush.bf16.msra.mxu0 %v1240
    %1254 = vmatpush.bf16.msra.mxu0 %v1239
    %1255 = vmatpush.bf16.msra.mxu0 %v1238
    %1256 = vmatpush.bf16.msra.mxu0 %v1237
    %1257 = vmatpush.bf16.msra.mxu0 %v1236
    %1258 = vmatpush.bf16.msra.mxu0 %v1235
    %1259 = vmatmul.bf16.gmra.mxu0 %v1185
    %v1260 = vpop.f32.mrf.mxu0
    %v1261 = vadd.f32 0.0, %v1260
    %v1262 = vpop.f32.mrf.mxu0
    %1263 = vdwg.mxu0
    %v1264 = vpack.c.bf16 %v1261, %v1261
    %v1265 = vshrl.u32 %v1112, 16
    %v1266 = vpack.i.b16 %v1265, %v1265
    %v1268 = vperm.slane %v1266, 2
    %v1269 = vunpack.c.l.bf16 %v1264
    %v1270 = vunpack.c.l.bf16 %v1268
    %v1271 = vadd.f32 %v1269, %v1270
    %v1272 = vpack.c.bf16 %v1271, %v1271
    %v1273 = vunpack.c.l.bf16 %v1272
    %v1274 = vmax.f32 %v1273, 0.0
    %v1275 = vpack.c.bf16 %v1274, %v1274
    %s1276 = scalar_lea.vmem [#allocation5], 896
    %v1277 = vld [vmem:[%s1276] sm:$0xf]
    %v1278 = vld [vmem:[%s1276 + $0x4] sm:$0xf]
    %v1279 = vld [vmem:[%s1276 + $0x8] sm:$0xf]
    %v1280 = vld [vmem:[%s1276 + $0xc] sm:$0xf]
    %v1281 = vld [vmem:[%s1276 + $0x10] sm:$0xf]
    %v1282 = vld [vmem:[%s1276 + $0x14] sm:$0xf]
    %v1283 = vld [vmem:[%s1276 + $0x18] sm:$0xf]
    %v1284 = vld [vmem:[%s1276 + $0x1c] sm:$0xf]
    %v1285 = vld [vmem:[%s1276 + $0x20] sm:$0xf]
    %v1286 = vld [vmem:[%s1276 + $0x24] sm:$0xf]
    %v1287 = vld [vmem:[%s1276 + $0x28] sm:$0xf]
    %v1288 = vld [vmem:[%s1276 + $0x2c] sm:$0xf]
    %v1289 = vld [vmem:[%s1276 + $0x30] sm:$0xf]
    %v1290 = vld [vmem:[%s1276 + $0x34] sm:$0xf]
    %v1291 = vld [vmem:[%s1276 + $0x38] sm:$0xf]
    %v1292 = vld [vmem:[%s1276 + $0x3c] sm:$0xf]
    %v1293 = vld [vmem:[#allocation7 + $0x4] sm:$0x8]
    %v1294 = vunpack.c.l.bf16 %v1293
    %v1295 = vperm.slane %v1294, 6
    %v1312 = vunpack.c.l.b16 %v1277
    %v1313 = vunpack.c.l.b16 %v1278
    %v1314 = vunpack.c.l.b16 %v1279
    %v1315 = vunpack.c.l.b16 %v1280
    %v1316 = vunpack.c.l.b16 %v1281
    %v1317 = vunpack.c.l.b16 %v1282
    %v1318 = vunpack.c.l.b16 %v1283
    %v1319 = vunpack.c.l.b16 %v1284
    %v1320 = vunpack.c.l.b16 %v1285
    %v1321 = vunpack.c.l.b16 %v1286
    %v1322 = vunpack.c.l.b16 %v1287
    %v1323 = vunpack.c.l.b16 %v1288
    %v1324 = vunpack.c.l.b16 %v1289
    %v1325 = vunpack.c.l.b16 %v1290
    %v1326 = vunpack.c.l.b16 %v1291
    %v1327 = vunpack.c.l.b16 %v1292
    %v1328 = vpack.c.b16 %v1313, %v1312
    %v1329 = vpack.c.b16 %v1315, %v1314
    %v1330 = vpack.c.b16 %v1317, %v1316
    %v1331 = vpack.c.b16 %v1319, %v1318
    %v1332 = vpack.c.b16 %v1321, %v1320
    %v1333 = vpack.c.b16 %v1323, %v1322
    %v1334 = vpack.c.b16 %v1325, %v1324
    %v1335 = vpack.c.b16 %v1327, %v1326
    %1344 = vmatpush.bf16.msra.mxu0 %v1335
    %1345 = vmatpush.bf16.msra.mxu0 %v1334
    %1346 = vmatpush.bf16.msra.mxu0 %v1333
    %1347 = vmatpush.bf16.msra.mxu0 %v1332
    %1348 = vmatpush.bf16.msra.mxu0 %v1331
    %1349 = vmatpush.bf16.msra.mxu0 %v1330
    %1350 = vmatpush.bf16.msra.mxu0 %v1329
    %1351 = vmatpush.bf16.msra.mxu0 %v1328
    %1352 = vmatmul.bf16.gmra.mxu0 %v1275
    %v1353 = vpop.f32.mrf.mxu0
    %v1354 = vadd.f32 %v1295, %v1353
    %v1355 = vpop.f32.mrf.mxu0
    %1356 = vdwg.mxu0
    %v1357 = vsub.f32 0.0, %v1354
    %v1358 = vmul.f32 %v1357, 1.442695
    %v1359 = vpow.pop %v1358
    %v1360 = vadd.f32 %v1359, 1.0
    %v1361 = vrcp.pop %v1360
    %vm1362 = vcmask 64512
    %1363 = vst.msk [vmem:[#allocation8] sm:$0xff] %vm1362, %v1361
    // Predicated region
    $region26: #{tpu_custom_call.1} parent=1 // pred_check
      _
    $region27: #{tpu_custom_call.1} parent=1 // pred_check_branch
      %1365 = sbr.rel (0) target = $region29
    $region28: #{tpu_custom_call.1} parent=1 // pred_region
      %1367 = vsyncadd [#allocation4], 0
      %s1369 = sshll.u32 [#allocation8], 4
      %s1370 = int_to_ptr.vmem [resolvable:$true] %s1369
      %s1371 = sshll.u32 %s3, 4
      %s1372 = int_to_ptr.hbm [resolvable:$true] %s1371
      %1374 = dma.vmem_to_hbm [thread:$0]  %s1370, 128, %s1372, [#allocation4]
    $region29: #{tpu_custom_call.1} parent=1 // pred_fallthru
      _
    // Predicated region
    $region30: #{tpu_custom_call.1} parent=1 // pred_check
      _
    $region31: #{tpu_custom_call.1} parent=1 // pred_check_branch
      %1376 = sbr.rel (0) target = $region33
    $region32: #{tpu_custom_call.1} parent=1 // pred_region
      %1378 = dma.done [#allocation4], 128
    $region33: #{tpu_custom_call.1} parent=1 // pred_fallthru
      _
    %1379 = vsyncpa [#allocation3], 1
    %1380 = vsyncpa [#allocation6], 1
    %1381 = vsyncpa [#allocation4], 1

</llo_original>
